<compile_context>
chip_gen: v5e
topology: v5e:2x2
jax: 0.10.0
libtpu: 0.0.40
codegen_flags: <defaults>
</compile_context>

<pallas_src>
import functools
import math

import jax
import jax.numpy as jnp
from jax.experimental import pallas as pl
from jax.experimental.pallas import tpu as pltpu


_EPS = 1e-5            # nn.LayerNorm(d_model, eps=1e-05) in the reference module
_NEG_INF = -1e18       # OpenNMT MultiHeadedAttention masked_fill value (f32 only)


# ----------------------------- in-kernel helpers -----------------------------

def _layer_norm(x, g, b):
    mu = jnp.mean(x, axis=-1, keepdims=True)
    var = jnp.mean((x - mu) * (x - mu), axis=-1, keepdims=True)
    return (x - mu) * jax.lax.rsqrt(var + _EPS) * g + b


def _gelu(x):
    # TODO(synk): the spec's MLP class is not defined; GPT-style tanh GELU assumed
    # (the pure-JAX reference below uses the same assumption).
    return 0.5 * x * (1.0 + jnp.tanh(0.7978845608028654 * (x + 0.044715 * x * x * x)))


# --------------------- kernel 1: fused K|V projection ------------------------

def _kv_proj_kernel(x_ref, g_ref, b_ref, wkv_ref, bkv_ref, k_ref, v_ref, *, apply_ln):
    x = x_ref[0]                                      # (tile, D) f32
    if apply_ln:
        x = _layer_norm(x, g_ref[...], b_ref[...])
    x = x.astype(jnp.bfloat16)
    d = x.shape[-1]
    # Single full-width matmul (N = 2D) instead of 2*heads dph-wide ones.
    kv = (jnp.dot(x, wkv_ref[...], preferred_element_type=jnp.float32)
          + bkv_ref[...]).astype(jnp.bfloat16)        # (tile, 2D)
    k_ref[0] = kv[:, :d]                              # lane-dense bf16 stores
    v_ref[0] = kv[:, d:]


# ----------------------- kernel 2: fused decoder layer ------------------------

def _decoder_layer_kernel(
        x_ref, k_self_ref, v_self_ref, k_mem_ref, v_mem_ref,
        tgt_bias_ref, src_bias_ref,
        ln1_g_ref, ln1_b_ref,
        sa_wq_ref, sa_bq_ref, sa_wo_ref, sa_bo_ref,
        ln2_g_ref, ln2_b_ref,
        ca_wq_ref, ca_bq_ref, ca_wo_ref, ca_bo_ref,
        ln3_g_ref, ln3_b_ref,
        ff_w1_ref, ff_b1_ref, ff_w2_ref, ff_b2_ref,
        out_ref, attn_ref, ctx_ref, *, heads):
    f32 = jnp.float32
    bf16 = jnp.bfloat16

    x = x_ref[0]                                      # (TQ, D) f32 query tile
    tq, d_model = x.shape
    dph = d_model // heads
    scale = 1.0 / math.sqrt(dph)
    qt = pl.program_id(1)
    nt_dims = (((1,), (1,)), ((), ()))                # q @ k^T (contract last dims)

    # ------------------ self attention (causal, key-tile skipping) ------------
    input_norm = _layer_norm(x, ln1_g_ref[...], ln1_b_ref[...]).astype(bf16)
    # Full-width Q projection: one (TQ,D)@(D,D) MXU pass; heads split by lane slice.
    q_self = ((jnp.dot(input_norm, sa_wq_ref[...], preferred_element_type=f32)
               + sa_bq_ref[...]) * scale).astype(bf16)

    row = jax.lax.broadcasted_iota(jnp.int32, (tq, tq), 0)

    def kv_step(kt, carry):
        ms, ls, accs = carry
        k_start = pl.multiple_of(kt * tq, tq)
        k_tile = k_self_ref[0, pl.ds(k_start, tq), :]          # (TQ, D) bf16
        v_tile = v_self_ref[0, pl.ds(k_start, tq), :]
        # Additive mask bias for this key tile, built once (outside the head loop):
        # causal (future) OR padded target keys.
        col = jax.lax.broadcasted_iota(jnp.int32, (tq, tq), 1) + (kt - qt) * tq
        bias = (jnp.where(col > row, _NEG_INF, 0.0)
                + tgt_bias_ref[0, pl.ds(kt, 1), :])            # (TQ, TQ) f32
        new_ms, new_ls, new_accs = [], [], []
        for h in range(heads):
            lo = h * dph
            s = jax.lax.dot_general(q_self[:, lo:lo + dph], k_tile[:, lo:lo + dph],
                                    nt_dims, preferred_element_type=f32) + bias
            m_new = jnp.maximum(ms[h], jnp.max(s, axis=-1, keepdims=True))
            alpha = jnp.exp(ms[h] - m_new)
            p = jnp.exp(s - m_new)
            new_ms.append(m_new)
            new_ls.append(alpha * ls[h] + jnp.sum(p, axis=-1, keepdims=True))
            new_accs.append(alpha * accs[h]
                            + jnp.dot(p.astype(bf16), v_tile[:, lo:lo + dph],
                                      preferred_element_type=f32))
        return new_ms, new_ls, new_accs

    init = ([jnp.full((tq, 1), -1e30, f32) for _ in range(heads)],
            [jnp.zeros((tq, 1), f32) for _ in range(heads)],
            [jnp.zeros((tq, dph), f32) for _ in range(heads)])
    # Only key tiles 0..qt are ever visible under the causal mask -> skip the rest.
    ms, ls, accs = jax.lax.fori_loop(0, qt + 1, kv_step, init)

    for h in range(heads):
        ctx_ref[:, h * dph:(h + 1) * dph] = (
            accs[h] * pl.reciprocal(ls[h], approx=True)).astype(bf16)
    # Single full-width output projection (K = D on the MXU) instead of per-head.
    sa_out = (jnp.dot(ctx_ref[...], sa_wo_ref[...], preferred_element_type=f32)
              + sa_bo_ref[...])
    # TODO(synk): self.drop / attention dropouts are eval-mode identities.
    query = sa_out + x

    # ------------------ context attention over memory_bank --------------------
    query_norm = _layer_norm(query, ln2_g_ref[...], ln2_b_ref[...]).astype(bf16)
    q_ctx = ((jnp.dot(query_norm, ca_wq_ref[...], preferred_element_type=f32)
              + ca_bq_ref[...]) * scale).astype(bf16)
    k_mem = k_mem_ref[0]                               # (S, D) bf16
    v_mem = v_mem_ref[0]
    src_bias = src_bias_ref[0]                         # (1, S) additive f32 bias
    for h in range(heads):
        lo = h * dph
        s = jax.lax.dot_general(q_ctx[:, lo:lo + dph], k_mem[:, lo:lo + dph],
                                nt_dims, preferred_element_type=f32) + src_bias
        m = jnp.max(s, axis=-1, keepdims=True)
        e = jnp.exp(s - m)
        denom = jnp.sum(e, axis=-1, keepdims=True)
        if h == 0:
            # Exact normalisation for the returned attention weights (top head).
            attn_ref[0] = (e / denom).astype(attn_ref.dtype)
        p = (e * pl.reciprocal(denom, approx=True)).astype(bf16)
        ctx_ref[:, lo:lo + dph] = jnp.dot(p, v_mem[:, lo:lo + dph],
                                          preferred_element_type=f32).astype(bf16)
    ca_out = (jnp.dot(ctx_ref[...], ca_wo_ref[...], preferred_element_type=f32)
              + ca_bo_ref[...])
    # TODO(synk): ctx_weight_param branch omitted (module default is False).
    mid = ca_out + query

    # ------------------ GPT MLP (external LN + residual, unchunked d_ff) ------
    mid_norm = _layer_norm(mid, ln3_g_ref[...], ln3_b_ref[...]).astype(bf16)
    inter = _gelu(jnp.dot(mid_norm, ff_w1_ref[...], preferred_element_type=f32)
                  + ff_b1_ref[...]).astype(bf16)
    ff_out = (jnp.dot(inter, ff_w2_ref[...], preferred_element_type=f32)
              + ff_b2_ref[...])
    out_ref[0] = ff_out + mid


# ---------------------------------- wrapper -----------------------------------

def _tpu_vmem_capacity_bytes():
    try:
        cap = getattr(pltpu.get_tpu_info(), "vmem_capacity_bytes", None)
        if cap:
            return int(cap)
    except Exception:
        pass
    try:
        kind = jax.devices()[0].device_kind.lower()
        if "v7" in kind:
            return 64 * 1024 * 1024
    except Exception:
        pass
    return 128 * 1024 * 1024


def _pick_tile(n, small_vmem):
    prefs = (256, 128, 64, 32, 16, 8) if small_vmem else (512, 256, 128, 64, 32, 16, 8)
    for t in prefs:
        if n % t == 0:
            return t
    return n          # tiny / odd lengths: one full-extent block


def _block_spec(shape, index_map, single_buffer):
    if single_buffer:
        # Weights / per-batch K-V slabs are never (or rarely) refetched; a single
        # pipeline buffer halves their VMEM footprint with ~zero pipelining loss.
        return pl.BlockSpec(shape, index_map, pipeline_mode=pl.Buffered(1))
    return pl.BlockSpec(shape, index_map)


def _rep_spec(shape, single_buffer):
    zeros = (0,) * len(shape)
    return _block_spec(shape, lambda b, q: zeros, single_buffer)


def _forward(inputs, memory_bank, src_pad_mask, tgt_pad_mask, params, heads,
             min_buffering):
    B, T, D = inputs.shape
    S = memory_bank.shape[1]
    assert D % heads == 0
    f32, bf16 = jnp.float32, jnp.bfloat16

    vmem_cap = _tpu_vmem_capacity_bytes()
    small_vmem = vmem_cap <= 80 * 1024 * 1024            # v7x-class parts (64 MiB)
    vmem_limit = int(min(vmem_cap * 3 // 4, 100 * 1024 * 1024))
    compiler_params = pltpu.CompilerParams(
        dimension_semantics=("parallel", "parallel"),     # both TCs get work (B*n_q >= 2)
        vmem_limit_bytes=vmem_limit)

    # ---------------- kernel 1: lane-dense K/V pre-projection (fused K|V) --------
    wkv_self = jnp.concatenate([params["sa_wk"], params["sa_wv"]], axis=1).astype(bf16)
    bkv_self = jnp.concatenate([params["sa_bk"], params["sa_bv"]], axis=1).astype(f32)
    wkv_mem = jnp.concatenate([params["ca_wk"], params["ca_wv"]], axis=1).astype(bf16)
    bkv_mem = jnp.concatenate([params["ca_bk"], params["ca_bv"]], axis=1).astype(f32)
    ln1_g = params["ln1_g"].astype(f32)
    ln1_b = params["ln1_b"].astype(f32)

    def kv_proj(x, wkv, bkv, apply_ln):
        Bx, L, _ = x.shape
        lt = _pick_tile(L, small_vmem)
        return pl.pallas_call(
            functools.partial(_kv_proj_kernel, apply_ln=apply_ln),
            grid=(Bx, L // lt),
            in_specs=[pl.BlockSpec((1, lt, D), lambda b, s: (b, s, 0))]
                     + [_rep_spec(a.shape, min_buffering)
                        for a in (ln1_g, ln1_b, wkv, bkv)],
            out_specs=(pl.BlockSpec((1, lt, D), lambda b, s: (b, s, 0)),
                       pl.BlockSpec((1, lt, D), lambda b, s: (b, s, 0))),
            out_shape=(jax.ShapeDtypeStruct((Bx, L, D), bf16),
                       jax.ShapeDtypeStruct((Bx, L, D), bf16)),
            compiler_params=compiler_params,
        )(x, ln1_g, ln1_b, wkv, bkv)

    k_self, v_self = kv_proj(inputs, wkv_self, bkv_self, True)
    # Memory-bank K/V use the raw memory bank (no LayerNorm); ln args are ignored.
    k_mem, v_mem = kv_proj(memory_bank, wkv_mem, bkv_mem, False)

    # ---------------- kernel 2: query-tiled fused decoder layer ------------------
    q_tile = _pick_tile(T, small_vmem)
    n_q = T // q_tile

    # Additive key biases (0 / -1e18): tgt bias pre-chunked per key tile for the
    # causal key-tile loop, src bias kept as (1, S).
    tgt_key_bias = jnp.where(tgt_pad_mask.reshape(B, T) > 0, _NEG_INF, 0.0
                             ).astype(f32).reshape(B, n_q, q_tile)
    src_key_bias = jnp.where(src_pad_mask.reshape(B, 1, S) > 0, _NEG_INF, 0.0).astype(f32)

    weights = [
        ln1_g, ln1_b,
        params["sa_wq"].astype(bf16), params["sa_bq"].astype(f32),
        params["sa_wo"].astype(bf16), params["sa_bo"].astype(f32),
        params["ln2_g"].astype(f32), params["ln2_b"].astype(f32),
        params["ca_wq"].astype(bf16), params["ca_bq"].astype(f32),
        params["ca_wo"].astype(bf16), params["ca_bo"].astype(f32),
        params["ln3_g"].astype(f32), params["ln3_b"].astype(f32),
        params["ff_w1"].astype(bf16), params["ff_b1"].astype(f32),
        params["ff_w2"].astype(bf16), params["ff_b2"].astype(f32),
    ]

    kv_single = min_buffering and small_vmem
    in_specs = [
        pl.BlockSpec((1, q_tile, D), lambda b, q: (b, q, 0)),           # inputs tile
        _block_spec((1, T, D), lambda b, q: (b, 0, 0), kv_single),      # k_self
        _block_spec((1, T, D), lambda b, q: (b, 0, 0), kv_single),      # v_self
        _block_spec((1, S, D), lambda b, q: (b, 0, 0), kv_single),      # k_mem
        _block_spec((1, S, D), lambda b, q: (b, 0, 0), kv_single),      # v_mem
        pl.BlockSpec((1, n_q, q_tile), lambda b, q: (b, 0, 0)),         # tgt key bias
        pl.BlockSpec((1, 1, S), lambda b, q: (b, 0, 0)),                # src key bias
    ] + [_rep_spec(w.shape, min_buffering) for w in weights]

    out_specs = (pl.BlockSpec((1, q_tile, D), lambda b, q: (b, q, 0)),
                 pl.BlockSpec((1, q_tile, S), lambda b, q: (b, q, 0)))
    # TODO(synk): callers should pad S to a multiple of 128 for unmasked lane-dense
    # attention stores; attn is emitted in bf16 to halve the (B,T,S) HBM writeback.
    out_shape = (jax.ShapeDtypeStruct((B, T, D), f32),
                 jax.ShapeDtypeStruct((B, T, S), bf16))

    out, attn = pl.pallas_call(
        functools.partial(_decoder_layer_kernel, heads=heads),
        grid=(B, n_q),
        in_specs=in_specs,
        out_specs=out_specs,
        out_shape=out_shape,
        scratch_shapes=[pltpu.VMEM((q_tile, D), bf16)],   # per-head ctx slab for W_o
        compiler_params=compiler_params,
    )(inputs, k_self, v_self, k_mem, v_mem, tgt_key_bias, src_key_bias, *weights)
    return out, attn


def transformer_gpt_decoder_layer_ctxattn(inputs, memory_bank, src_pad_mask,
                                          tgt_pad_mask, params, heads):
    try:
        return _forward(inputs, memory_bank, src_pad_mask, tgt_pad_mask, params,
                        heads, min_buffering=True)
    except Exception:
        # Fallback for jax versions without BlockSpec(pipeline_mode=pl.Buffered(1)).
        return _forward(inputs, memory_bank, src_pad_mask, tgt_pad_mask, params,
                        heads, min_buffering=False)


# ----------------------- pure-JAX reference (for the check) -------------------

def _reference(inputs, memory_bank, src_pad_mask, tgt_pad_mask, p, heads,
               mm_dtype=jnp.bfloat16):
    """Reference forward.  mm_dtype mirrors the kernel's mixed-precision policy
    (bf16 matmul operands, f32 accumulation)."""
    def c(x):
        return x.astype(mm_dtype).astype(jnp.float32)

    def ln(x, g, b):
        mu = x.mean(-1, keepdims=True)
        var = ((x - mu) ** 2).mean(-1, keepdims=True)
        return (x - mu) / jnp.sqrt(var + _EPS) * g + b

    def mha(key, value, query, wq, bq, wk, bk, wv, bv, wo, bo, mask):
        B, Tq, D = query.shape
        S = key.shape[1]
        dph = D // heads
        q = (jnp.einsum('btd,de->bte', c(query), c(wq)) + bq) / math.sqrt(dph)
        k = jnp.einsum('bsd,de->bse', c(key), c(wk)) + bk
        v = jnp.einsum('bsd,de->bse', c(value), c(wv)) + bv
        q = q.reshape(B, Tq, heads, dph).transpose(0, 2, 1, 3)
        k = k.reshape(B, S, heads, dph).transpose(0, 2, 1, 3)
        v = v.reshape(B, S, heads, dph).transpose(0, 2, 1, 3)
        scores = jnp.einsum('bhqd,bhkd->bhqk', c(q), c(k))
        scores = jnp.where(mask[:, None], _NEG_INF, scores)
        attn = jax.nn.softmax(scores, axis=-1)
        ctx = jnp.einsum('bhqk,bhkd->bhqd', c(attn), c(v))
        ctx = ctx.transpose(0, 2, 1, 3).reshape(B, Tq, D)
        return jnp.einsum('btd,de->bte', c(ctx), c(wo)) + bo, attn[:, 0]

    T = inputs.shape[1]
    future = jnp.triu(jnp.ones((T, T), jnp.float32), 1)
    dec_mask = (tgt_pad_mask + future[None]) > 0          # (B, T, T)
    src_mask = src_pad_mask > 0                           # (B, 1, S)

    input_norm = ln(inputs, p["ln1_g"], p["ln1_b"])
    q_sa, _ = mha(input_norm, input_norm, input_norm,
                  p["sa_wq"], p["sa_bq"], p["sa_wk"], p["sa_bk"],
                  p["sa_wv"], p["sa_bv"], p["sa_wo"], p["sa_bo"], dec_mask)
    query = q_sa + inputs
    query_norm = ln(query, p["ln2_g"], p["ln2_b"])
    mid, attn = mha(memory_bank, memory_bank, query_norm,
                    p["ca_wq"], p["ca_bq"], p["ca_wk"], p["ca_bk"],
                    p["ca_wv"], p["ca_bv"], p["ca_wo"], p["ca_bo"], src_mask)
    mid = mid + query
    mid_norm = ln(mid, p["ln3_g"], p["ln3_b"])
    inter = _gelu(jnp.einsum('btd,df->btf', c(mid_norm), c(p["ff_w1"])) + p["ff_b1"])
    out = jnp.einsum('btf,fd->btd', c(inter), c(p["ff_w2"])) + p["ff_b2"] + mid
    return out, attn


# ------------------------------------ main ------------------------------------

def _make_params(key, d_model, d_ff):
    def lin(k, din, dout):
        kw, kb = jax.random.split(k)
        w = jax.random.normal(kw, (din, dout), jnp.float32) * (1.0 / math.sqrt(din))
        b = jax.random.normal(kb, (1, dout), jnp.float32) * 0.02
        return w, b

    ks = jax.random.split(key, 13)
    p = {}
    for i, name in enumerate(("ln1", "ln2", "ln3")):
        kg, kb = jax.random.split(ks[10 + i])
        p[name + "_g"] = 1.0 + 0.1 * jax.random.normal(kg, (1, d_model), jnp.float32)
        p[name + "_b"] = 0.05 * jax.random.normal(kb, (1, d_model), jnp.float32)
    p["sa_wq"], p["sa_bq"] = lin(ks[0], d_model, d_model)
    p["sa_wk"], p["sa_bk"] = lin(ks[1], d_model, d_model)
    p["sa_wv"], p["sa_bv"] = lin(ks[2], d_model, d_model)
    p["sa_wo"], p["sa_bo"] = lin(ks[3], d_model, d_model)
    p["ca_wq"], p["ca_bq"] = lin(ks[4], d_model, d_model)
    p["ca_wk"], p["ca_bk"] = lin(ks[5], d_model, d_model)
    p["ca_wv"], p["ca_bv"] = lin(ks[6], d_model, d_model)
    p["ca_wo"], p["ca_bo"] = lin(ks[7], d_model, d_model)
    p["ff_w1"], p["ff_b1"] = lin(ks[8], d_model, d_ff)
    p["ff_w2"], p["ff_b2"] = lin(ks[9], d_ff, d_model)
    return p


if __name__ == "__main__":
    B, T, S = 2, 8, 16
    d_model, heads = 32, 4
    d_ff = 4 * d_model                      # feed_forward = MLP(d_model, d_model * 4)

    root = jax.random.PRNGKey(0)
    k_par, k_in, k_mem = jax.random.split(root, 3)
    params = _make_params(k_par, d_model, d_ff)

    inputs = jax.random.normal(k_in, (B, T, d_model), jnp.float32)
    memory_bank = jax.random.normal(k_mem, (B, S, d_model), jnp.float32)

    tgt_pad_mask = jnp.zeros((B, 1, T), jnp.float32)
    tgt_pad_mask = tgt_pad_mask.at[1, 0, T - 2:].set(1.0)   # batch 1: last 2 tgt padded
    src_pad_mask = jnp.zeros((B, 1, S), jnp.float32)
    src_pad_mask = src_pad_mask.at[1, 0, S - 4:].set(1.0)   # batch 1: last 4 src padded

    out, attn = transformer_gpt_decoder_layer_ctxattn(
        inputs, memory_bank, src_pad_mask, tgt_pad_mask, params, heads)
    out = jax.block_until_ready(out)
    attn = jax.block_until_ready(attn)

    ref_out, ref_attn = _reference(inputs, memory_bank, src_pad_mask,
                                   tgt_pad_mask, params, heads)

    assert out.shape == (B, T, d_model) and attn.shape == (B, T, S)
    # Tolerances cover f32 accumulation-order differences (online softmax) and the
    # approximate reciprocal used for internal context normalisation; the reference
    # mirrors the bf16 matmul-operand rounding.
    assert jnp.allclose(out, ref_out, atol=2e-2, rtol=2e-2), "output mismatch"
    assert jnp.allclose(attn.astype(jnp.float32), ref_attn,
                        atol=1e-2, rtol=1e-2), "attention mismatch"

    print("KERNEL_OK")
</pallas_src>

<mosaic_0001>
module attributes {stable_mosaic.version = 11 : i64} {
  func.func @_kv_proj_kernel(%arg0: i32, %arg1: i32, %arg2: memref<1x8x32xf32, #tpu.memory_space<vmem>>, %arg3: memref<1x32xf32, #tpu.memory_space<vmem>>, %arg4: memref<1x32xf32, #tpu.memory_space<vmem>>, %arg5: memref<32x64xbf16, #tpu.memory_space<vmem>>, %arg6: memref<1x64xf32, #tpu.memory_space<vmem>>, %arg7: memref<1x8x32xbf16, #tpu.memory_space<vmem>>, %arg8: memref<1x8x32xbf16, #tpu.memory_space<vmem>>) attributes {dimension_semantics = [#tpu.dimension_semantics<parallel>, #tpu.dimension_semantics<parallel>], iteration_bounds = array<i64: 2, 1>, scalar_prefetch = 0 : i64, scratch_operands = 0 : i64, tpu.core_type = #tpu.core_type<tc>, window_params = [{transform_indices = @transform_0, window_bounds = array<i64: 1, 8, 32>}, {pipeline_mode = #tpu.pipeline_mode<synchronous>, transform_indices = @transform_1, window_bounds = array<i64: 1, 32>}, {pipeline_mode = #tpu.pipeline_mode<synchronous>, transform_indices = @transform_2, window_bounds = array<i64: 1, 32>}, {pipeline_mode = #tpu.pipeline_mode<synchronous>, transform_indices = @transform_3, window_bounds = array<i64: 32, 64>}, {pipeline_mode = #tpu.pipeline_mode<synchronous>, transform_indices = @transform_4, window_bounds = array<i64: 1, 64>}, {transform_indices = @transform_5, window_bounds = array<i64: 1, 8, 32>}, {transform_indices = @transform_6, window_bounds = array<i64: 1, 8, 32>}]} {
    %c0 = arith.constant 0 : index
    %c0_0 = arith.constant 0 : index
    %c0_1 = arith.constant 0 : index
    %0 = vector.load %arg2[%c0, %c0_0, %c0_1] : memref<1x8x32xf32, #tpu.memory_space<vmem>>, vector<1x8x32xf32>
    %1 = vector.shape_cast %0 : vector<1x8x32xf32> to vector<8x32xf32>
    %c0_2 = arith.constant 0 : index
    %c0_3 = arith.constant 0 : index
    %2 = vector.load %arg3[%c0_2, %c0_3] : memref<1x32xf32, #tpu.memory_space<vmem>>, vector<1x32xf32>
    %c0_4 = arith.constant 0 : index
    %c0_5 = arith.constant 0 : index
    %3 = vector.load %arg4[%c0_4, %c0_5] : memref<1x32xf32, #tpu.memory_space<vmem>>, vector<1x32xf32>
    %cst = arith.constant dense<0.000000e+00> : vector<8xf32>
    %4 = vector.multi_reduction <add>, %1, %cst [1] : vector<8x32xf32> to vector<8xf32>
    %5 = vector.shape_cast %4 : vector<8xf32> to vector<8x1xf32>
    %cst_6 = arith.constant 3.200000e+01 : f32
    %6 = vector.broadcast %cst_6 : f32 to vector<8x1xf32>
    %7 = arith.divf %5, %6 : vector<8x1xf32>
    %8 = vector.broadcast %7 : vector<8x1xf32> to vector<8x32xf32>
    %9 = arith.subf %1, %8 : vector<8x32xf32>
    %10 = vector.broadcast %7 : vector<8x1xf32> to vector<8x32xf32>
    %11 = arith.subf %1, %10 : vector<8x32xf32>
    %12 = arith.mulf %9, %11 : vector<8x32xf32>
    %cst_7 = arith.constant dense<0.000000e+00> : vector<8xf32>
    %13 = vector.multi_reduction <add>, %12, %cst_7 [1] : vector<8x32xf32> to vector<8xf32>
    %14 = vector.shape_cast %13 : vector<8xf32> to vector<8x1xf32>
    %cst_8 = arith.constant 3.200000e+01 : f32
    %15 = vector.broadcast %cst_8 : f32 to vector<8x1xf32>
    %16 = arith.divf %14, %15 : vector<8x1xf32>
    %17 = vector.broadcast %7 : vector<8x1xf32> to vector<8x32xf32>
    %18 = arith.subf %1, %17 : vector<8x32xf32>
    %cst_9 = arith.constant 9.99999974E-6 : f32
    %19 = vector.broadcast %cst_9 : f32 to vector<8x1xf32>
    %20 = arith.addf %16, %19 : vector<8x1xf32>
    %21 = math.rsqrt %20 : vector<8x1xf32>
    %22 = vector.broadcast %21 : vector<8x1xf32> to vector<8x32xf32>
    %23 = arith.mulf %18, %22 : vector<8x32xf32>
    %24 = vector.broadcast %2 : vector<1x32xf32> to vector<8x32xf32>
    %25 = arith.mulf %23, %24 : vector<8x32xf32>
    %26 = vector.broadcast %3 : vector<1x32xf32> to vector<8x32xf32>
    %27 = arith.addf %25, %26 : vector<8x32xf32>
    %28 = arith.truncf %27 : vector<8x32xf32> to vector<8x32xbf16>
    %c0_10 = arith.constant 0 : index
    %c0_11 = arith.constant 0 : index
    %29 = vector.load %arg5[%c0_10, %c0_11] : memref<32x64xbf16, #tpu.memory_space<vmem>>, vector<32x64xbf16>
    %cst_12 = arith.constant dense<0.000000e+00> : vector<8x64xf32>
    %30 = tpu.matmul %28, %29, %cst_12 {dimension_numbers = #tpu.dot_dimension_numbers<[1], [0], [0], [1], [0, 0, 1, 1], [], []>} : vector<8x32xbf16>, vector<32x64xbf16>, vector<8x64xf32> -> vector<8x64xf32>
    %c0_13 = arith.constant 0 : index
    %c0_14 = arith.constant 0 : index
    %31 = vector.load %arg6[%c0_13, %c0_14] : memref<1x64xf32, #tpu.memory_space<vmem>>, vector<1x64xf32>
    %32 = vector.broadcast %31 : vector<1x64xf32> to vector<8x64xf32>
    %33 = arith.addf %30, %32 : vector<8x64xf32>
    %34 = arith.truncf %33 : vector<8x64xf32> to vector<8x64xbf16>
    %35 = vector.extract_strided_slice %34 {offsets = [0, 0], sizes = [8, 32], strides = [1, 1]} : vector<8x64xbf16> to vector<8x32xbf16>
    %c0_15 = arith.constant 0 : index
    %c0_16 = arith.constant 0 : index
    %c0_17 = arith.constant 0 : index
    %36 = vector.load %arg7[%c0_15, %c0_16, %c0_17] : memref<1x8x32xbf16, #tpu.memory_space<vmem>>, vector<1x8x32xbf16>
    %37 = vector.shape_cast %36 : vector<1x8x32xbf16> to vector<8x32xbf16>
    %38 = vector.shape_cast %35 : vector<8x32xbf16> to vector<1x8x32xbf16>
    tpu.vector_store %arg7[%c0_15, %c0_16, %c0_17], %38 {strides = array<i32>} : memref<1x8x32xbf16, #tpu.memory_space<vmem>>, vector<1x8x32xbf16>,
    %39 = vector.extract_strided_slice %34 {offsets = [0, 32], sizes = [8, 32], strides = [1, 1]} : vector<8x64xbf16> to vector<8x32xbf16>
    %c0_18 = arith.constant 0 : index
    %c0_19 = arith.constant 0 : index
    %c0_20 = arith.constant 0 : index
    %40 = vector.load %arg8[%c0_18, %c0_19, %c0_20] : memref<1x8x32xbf16, #tpu.memory_space<vmem>>, vector<1x8x32xbf16>
    %41 = vector.shape_cast %40 : vector<1x8x32xbf16> to vector<8x32xbf16>
    %42 = vector.shape_cast %39 : vector<8x32xbf16> to vector<1x8x32xbf16>
    tpu.vector_store %arg8[%c0_18, %c0_19, %c0_20], %42 {strides = array<i32>} : memref<1x8x32xbf16, #tpu.memory_space<vmem>>, vector<1x8x32xbf16>,
    return
  }
  func.func @transform_0(%arg0: i32, %arg1: i32) -> (i32, i32, i32) {
    %c0_i32 = arith.constant 0 : i32
    %c0_i32_0 = arith.constant 0 : i32
    return %arg0, %arg1, %c0_i32 : i32, i32, i32
  }
  func.func @transform_1(%arg0: i32, %arg1: i32) -> (i32, i32) {
    %c0_i32 = arith.constant 0 : i32
    %c0_i32_0 = arith.constant 0 : i32
    %c0_i32_1 = arith.constant 0 : i32
    return %c0_i32, %c0_i32_0 : i32, i32
  }
  func.func @transform_2(%arg0: i32, %arg1: i32) -> (i32, i32) {
    %c0_i32 = arith.constant 0 : i32
    %c0_i32_0 = arith.constant 0 : i32
    %c0_i32_1 = arith.constant 0 : i32
    return %c0_i32, %c0_i32_0 : i32, i32
  }
  func.func @transform_3(%arg0: i32, %arg1: i32) -> (i32, i32) {
    %c0_i32 = arith.constant 0 : i32
    %c0_i32_0 = arith.constant 0 : i32
    %c0_i32_1 = arith.constant 0 : i32
    return %c0_i32, %c0_i32_0 : i32, i32
  }
  func.func @transform_4(%arg0: i32, %arg1: i32) -> (i32, i32) {
    %c0_i32 = arith.constant 0 : i32
    %c0_i32_0 = arith.constant 0 : i32
    %c0_i32_1 = arith.constant 0 : i32
    return %c0_i32, %c0_i32_0 : i32, i32
  }
  func.func @transform_5(%arg0: i32, %arg1: i32) -> (i32, i32, i32) {
    %c0_i32 = arith.constant 0 : i32
    %c0_i32_0 = arith.constant 0 : i32
    return %arg0, %arg1, %c0_i32 : i32, i32, i32
  }
  func.func @transform_6(%arg0: i32, %arg1: i32) -> (i32, i32, i32) {
    %c0_i32 = arith.constant 0 : i32
    %c0_i32_0 = arith.constant 0 : i32
    return %arg0, %arg1, %c0_i32 : i32, i32, i32
  }
}

module attributes {stable_mosaic.version = 11 : i64} {
  func.func @_kv_proj_kernel(%arg0: i32, %arg1: i32, %arg2: memref<1x8x32xf32, #tpu.memory_space<vmem>>, %arg3: memref<1x32xf32, #tpu.memory_space<vmem>>, %arg4: memref<1x32xf32, #tpu.memory_space<vmem>>, %arg5: memref<32x64xbf16, #tpu.memory_space<vmem>>, %arg6: memref<1x64xf32, #tpu.memory_space<vmem>>, %arg7: memref<1x8x32xbf16, #tpu.memory_space<vmem>>, %arg8: memref<1x8x32xbf16, #tpu.memory_space<vmem>>) attributes {dimension_semantics = [#tpu.dimension_semantics<parallel>, #tpu.dimension_semantics<parallel>], iteration_bounds = array<i64: 2, 1>, scalar_prefetch = 0 : i64, scratch_operands = 0 : i64, tpu.core_type = #tpu.core_type<tc>, window_params = [{transform_indices = @transform_0, window_bounds = array<i64: 1, 8, 32>}, {pipeline_mode = #tpu.pipeline_mode<synchronous>, transform_indices = @transform_1, window_bounds = array<i64: 1, 32>}, {pipeline_mode = #tpu.pipeline_mode<synchronous>, transform_indices = @transform_2, window_bounds = array<i64: 1, 32>}, {pipeline_mode = #tpu.pipeline_mode<synchronous>, transform_indices = @transform_3, window_bounds = array<i64: 32, 64>}, {pipeline_mode = #tpu.pipeline_mode<synchronous>, transform_indices = @transform_4, window_bounds = array<i64: 1, 64>}, {transform_indices = @transform_5, window_bounds = array<i64: 1, 8, 32>}, {transform_indices = @transform_6, window_bounds = array<i64: 1, 8, 32>}]} {
    %c0 = arith.constant 0 : index
    %c0_0 = arith.constant 0 : index
    %c0_1 = arith.constant 0 : index
    %0 = vector.load %arg2[%c0, %c0_0, %c0_1] : memref<1x8x32xf32, #tpu.memory_space<vmem>>, vector<1x8x32xf32>
    %1 = vector.shape_cast %0 : vector<1x8x32xf32> to vector<8x32xf32>
    %c0_2 = arith.constant 0 : index
    %c0_3 = arith.constant 0 : index
    %2 = vector.load %arg3[%c0_2, %c0_3] : memref<1x32xf32, #tpu.memory_space<vmem>>, vector<1x32xf32>
    %c0_4 = arith.constant 0 : index
    %c0_5 = arith.constant 0 : index
    %3 = vector.load %arg4[%c0_4, %c0_5] : memref<1x32xf32, #tpu.memory_space<vmem>>, vector<1x32xf32>
    %cst = arith.constant dense<0.000000e+00> : vector<8xf32>
    %4 = vector.multi_reduction <add>, %1, %cst [1] : vector<8x32xf32> to vector<8xf32>
    %5 = vector.shape_cast %4 : vector<8xf32> to vector<8x1xf32>
    %cst_6 = arith.constant 3.200000e+01 : f32
    %6 = vector.broadcast %cst_6 : f32 to vector<8x1xf32>
    %7 = arith.divf %5, %6 : vector<8x1xf32>
    %8 = vector.broadcast %7 : vector<8x1xf32> to vector<8x32xf32>
    %9 = arith.subf %1, %8 : vector<8x32xf32>
    %10 = vector.broadcast %7 : vector<8x1xf32> to vector<8x32xf32>
    %11 = arith.subf %1, %10 : vector<8x32xf32>
    %12 = arith.mulf %9, %11 : vector<8x32xf32>
    %cst_7 = arith.constant dense<0.000000e+00> : vector<8xf32>
    %13 = vector.multi_reduction <add>, %12, %cst_7 [1] : vector<8x32xf32> to vector<8xf32>
    %14 = vector.shape_cast %13 : vector<8xf32> to vector<8x1xf32>
    %cst_8 = arith.constant 3.200000e+01 : f32
    %15 = vector.broadcast %cst_8 : f32 to vector<8x1xf32>
    %16 = arith.divf %14, %15 : vector<8x1xf32>
    %17 = vector.broadcast %7 : vector<8x1xf32> to vector<8x32xf32>
    %18 = arith.subf %1, %17 : vector<8x32xf32>
    %cst_9 = arith.constant 9.99999974E-6 : f32
    %19 = vector.broadcast %cst_9 : f32 to vector<8x1xf32>
    %20 = arith.addf %16, %19 : vector<8x1xf32>
    %21 = math.rsqrt %20 : vector<8x1xf32>
    %22 = vector.broadcast %21 : vector<8x1xf32> to vector<8x32xf32>
    %23 = arith.mulf %18, %22 : vector<8x32xf32>
    %24 = vector.broadcast %2 : vector<1x32xf32> to vector<8x32xf32>
    %25 = arith.mulf %23, %24 : vector<8x32xf32>
    %26 = vector.broadcast %3 : vector<1x32xf32> to vector<8x32xf32>
    %27 = arith.addf %25, %26 : vector<8x32xf32>
    %28 = arith.truncf %27 : vector<8x32xf32> to vector<8x32xbf16>
    %c0_10 = arith.constant 0 : index
    %c0_11 = arith.constant 0 : index
    %29 = vector.load %arg5[%c0_10, %c0_11] : memref<32x64xbf16, #tpu.memory_space<vmem>>, vector<32x64xbf16>
    %cst_12 = arith.constant dense<0.000000e+00> : vector<8x64xf32>
    %30 = tpu.matmul %28, %29, %cst_12 {dimension_numbers = #tpu.dot_dimension_numbers<[1], [0], [0], [1], [0, 0, 1, 1], [], []>} : vector<8x32xbf16>, vector<32x64xbf16>, vector<8x64xf32> -> vector<8x64xf32>
    %c0_13 = arith.constant 0 : index
    %c0_14 = arith.constant 0 : index
    %31 = vector.load %arg6[%c0_13, %c0_14] : memref<1x64xf32, #tpu.memory_space<vmem>>, vector<1x64xf32>
    %32 = vector.broadcast %31 : vector<1x64xf32> to vector<8x64xf32>
    %33 = arith.addf %30, %32 : vector<8x64xf32>
    %34 = arith.truncf %33 : vector<8x64xf32> to vector<8x64xbf16>
    %35 = vector.extract_strided_slice %34 {offsets = [0, 0], sizes = [8, 32], strides = [1, 1]} : vector<8x64xbf16> to vector<8x32xbf16>
    %c0_15 = arith.constant 0 : index
    %c0_16 = arith.constant 0 : index
    %c0_17 = arith.constant 0 : index
    %36 = vector.load %arg7[%c0_15, %c0_16, %c0_17] : memref<1x8x32xbf16, #tpu.memory_space<vmem>>, vector<1x8x32xbf16>
    %37 = vector.shape_cast %36 : vector<1x8x32xbf16> to vector<8x32xbf16>
    %38 = vector.shape_cast %35 : vector<8x32xbf16> to vector<1x8x32xbf16>
    tpu.vector_store %arg7[%c0_15, %c0_16, %c0_17], %38 {strides = array<i32>} : memref<1x8x32xbf16, #tpu.memory_space<vmem>>, vector<1x8x32xbf16>,
    %39 = vector.extract_strided_slice %34 {offsets = [0, 32], sizes = [8, 32], strides = [1, 1]} : vector<8x64xbf16> to vector<8x32xbf16>
    %c0_18 = arith.constant 0 : index
    %c0_19 = arith.constant 0 : index
    %c0_20 = arith.constant 0 : index
    %40 = vector.load %arg8[%c0_18, %c0_19, %c0_20] : memref<1x8x32xbf16, #tpu.memory_space<vmem>>, vector<1x8x32xbf16>
    %41 = vector.shape_cast %40 : vector<1x8x32xbf16> to vector<8x32xbf16>
    %42 = vector.shape_cast %39 : vector<8x32xbf16> to vector<1x8x32xbf16>
    tpu.vector_store %arg8[%c0_18, %c0_19, %c0_20], %42 {strides = array<i32>} : memref<1x8x32xbf16, #tpu.memory_space<vmem>>, vector<1x8x32xbf16>,
    return
  }
  func.func @transform_0(%arg0: i32, %arg1: i32) -> (i32, i32, i32) {
    %c0_i32 = arith.constant 0 : i32
    %c0_i32_0 = arith.constant 0 : i32
    return %arg0, %arg1, %c0_i32 : i32, i32, i32
  }
  func.func @transform_1(%arg0: i32, %arg1: i32) -> (i32, i32) {
    %c0_i32 = arith.constant 0 : i32
    %c0_i32_0 = arith.constant 0 : i32
    %c0_i32_1 = arith.constant 0 : i32
    return %c0_i32, %c0_i32_0 : i32, i32
  }
  func.func @transform_2(%arg0: i32, %arg1: i32) -> (i32, i32) {
    %c0_i32 = arith.constant 0 : i32
    %c0_i32_0 = arith.constant 0 : i32
    %c0_i32_1 = arith.constant 0 : i32
    return %c0_i32, %c0_i32_0 : i32, i32
  }
  func.func @transform_3(%arg0: i32, %arg1: i32) -> (i32, i32) {
    %c0_i32 = arith.constant 0 : i32
    %c0_i32_0 = arith.constant 0 : i32
    %c0_i32_1 = arith.constant 0 : i32
    return %c0_i32, %c0_i32_0 : i32, i32
  }
  func.func @transform_4(%arg0: i32, %arg1: i32) -> (i32, i32) {
    %c0_i32 = arith.constant 0 : i32
    %c0_i32_0 = arith.constant 0 : i32
    %c0_i32_1 = arith.constant 0 : i32
    return %c0_i32, %c0_i32_0 : i32, i32
  }
  func.func @transform_5(%arg0: i32, %arg1: i32) -> (i32, i32, i32) {
    %c0_i32 = arith.constant 0 : i32
    %c0_i32_0 = arith.constant 0 : i32
    return %arg0, %arg1, %c0_i32 : i32, i32, i32
  }
  func.func @transform_6(%arg0: i32, %arg1: i32) -> (i32, i32, i32) {
    %c0_i32 = arith.constant 0 : i32
    %c0_i32_0 = arith.constant 0 : i32
    return %arg0, %arg1, %c0_i32 : i32, i32, i32
  }
}

</mosaic_0001>

<llo_original>
// kernel: tpu_custom_call.1
$region0: #{tpu_custom_call.1}
  #allocation0 [shape = 'u32[]', space=smem, size = 0x4, offset = 0x4, fixed_abs, tag = 'smem constant byte address 0x4 - core index']
  #allocation1 [shape = 'u32[72,128]{1,0:T(1,128)}', space=vmem, size = 0x9000, scoped, tag = 'internal scratch']
  %s0 = inlined_call_operand.hbm [shape: f32[2,8,32], index: 0, kind: input, shape index: {}]
  %s1 = inlined_call_operand.hbm [shape: f32[1,32], index: 1, kind: input, shape index: {}]
  %s2 = inlined_call_operand.vmem [shape: f32[1,32], index: 2, kind: input, shape index: {}]
  %s3 = inlined_call_operand.hbm [shape: bf16[32,64], index: 3, kind: input, shape index: {}]
  %s4 = inlined_call_operand.vmem [shape: f32[1,64], index: 4, kind: input, shape index: {}]
  %s5 = inlined_call_operand.hbm [shape: bf16[2,8,32], index: 5, kind: output, shape index: {0}]
  %s6 = inlined_call_operand.hbm [shape: bf16[2,8,32], index: 6, kind: output, shape index: {1}]
  %7 = xla_tuple %s5, %s6
  %s8 = sld [smem:[#allocation0]]
  $region73: #{tpu_custom_call.1} parent=0
    _
  %s10 = ssub.s32 1, %s8
  %s11 = scalar_select 0, %s10, %s8
  $region1: #{tpu_custom_call.1} parent=0
    #allocation2 [shape = 'u8[8192]{0}', space=vmem, size = 0x2000, scoped, tag = 'input window, operand 0']
    #allocation3 [shape = 's32[2]{0}', space=sflag, size = 0x8, scoped, tag = 'scoped memory for tpu_custom_call.1']
    #allocation4 [shape = 's32[2]{0}', space=sflag, size = 0x8, scoped, tag = 'scoped memory for tpu_custom_call.1']
    #allocation5 [shape = 'u8[512]{0}', space=vmem, size = 0x400, scoped, tag = 'input window, operand 1, single buffered']
    #allocation6 [shape = 's32[1]{0}', space=sflag, size = 0x4, scoped, tag = 'scoped memory for tpu_custom_call.1']
    #allocation7 [shape = 'u8[8192]{0}', space=vmem, size = 0x2000, scoped, tag = 'input window, operand 3, single buffered']
    #allocation8 [shape = 'u8[4096]{0}', space=vmem, size = 0x1000, scoped, tag = 'output window, operand 0']
    #allocation9 [shape = 'u8[4096]{0}', space=vmem, size = 0x1000, scoped, tag = 'output window, operand 1']
    #allocation10 [shape = 's32[2]{0}', space=sflag, size = 0x8, scoped, tag = 'scoped memory for tpu_custom_call.1']
    %12 = vsyncpa [#allocation3], 0
    %s13 = scalar_lea.sflag [#allocation3], 1
    %14 = vsyncpa %s13, 0
    %15 = vsyncpa [#allocation6], 0
    %16 = vsyncpa [#allocation4], 0
    %s17 = scalar_lea.sflag [#allocation4], 1
    %18 = vsyncpa %s17, 0
    %19 = vsyncpa [#allocation10], 0
    %s20 = scalar_lea.sflag [#allocation10], 1
    %21 = vsyncpa %s20, 0
    loop: start=0, step=1, limit=4
    $region2: #{tpu_custom_call.1} parent=1 // loop_pre_header
      _
    $region3: #{tpu_custom_call.1} parent=1 // loop_header
      %s23 = sphi 0, %s27
      %p24 = scmp.ge.s32.totalorder %s23, 4
      %s30 = sphi 0, %s42
      %s31 = sphi 0, %s38
      %s32 = sphi 0, %s30
      %s33 = sphi 0, %s31
      %s34 = sphi 0, %s32
      %s35 = sphi 0, %s33
      %s47 = sphi 0, %s49
      %s50 = sphi 0, %s47
      %s51 = sphi 0, %s50
      %s67 = sphi 0, %s51
      %s71 = sphi 0, %s71
      %s73 = sphi 0, %s71
      %s74 = sphi 0, %s73
      %s88 = sphi 0, %s74
      %s92 = sphi 0, %s92
      %s94 = sphi 0, %s92
      %s95 = sphi 0, %s94
      %s109 = sphi 0, %s95
      %s113 = sphi 0, %s113
      %s115 = sphi 0, %s113
      %s116 = sphi 0, %s115
      %s130 = sphi 0, %s116
      %s134 = sphi 0, %s134
      %s136 = sphi 0, %s134
      %s137 = sphi 0, %s136
      %s151 = sphi 0, %s137
      %s159 = sphi 0, %s161
      %s162 = sphi 0, %s159
      %s163 = sphi 0, %s162
      %s179 = sphi 0, %s163
      %s187 = sphi 0, %s189
      %s190 = sphi 0, %s187
      %s191 = sphi 0, %s190
      %s207 = sphi 0, %s191
    $region4: #{tpu_custom_call.1} parent=1 // loop_header_branch
      %26 = sbr.rel (%p24) target = $region8
    $region5: #{tpu_custom_call.1} parent=1 // loop_body
      %s28 = ssub.s32 %s23, 1
      %s29 = ssub.s32 %s23, 2
      %s36 = sadd.s32 1, %s31
      %p37 = scmp.ge.s32.totalorder %s36, 1
      %s38 = scalar_select %p37, 0, %s36
      %s39 = sadd.s32 1, %s30
      %s40 = scalar_select %p37, %s39, %s30
      %p41 = scmp.ge.s32.totalorder %s40, 2
      %s42 = scalar_select %p41, 0, %s40
      %s43 = ssub.s32 %s30, %s42
      %s44 = ssub.s32 %s31, %s38
      %s45 = sor.u32 %s43, %s44
      %p46 = scmp.eq.s32.totalorder %s45, 0
      %s48 = sadd.s32 %s47, 1
      %s49 = scalar_select %p46, %s47, %s48
      %p52 = pneg %p46
      %p53 = scmp.eq.s32.totalorder %s23, 1
      %p54 = por %p52, %p53
      %p55 = scmp.ne.s32.totalorder %s47, %s50
      %p56 = scmp.eq.s32.totalorder %s23, 0
      %p57 = por %p55, %p56
      %p58 = scmp.ne.s32.totalorder %s47, %s50
      %p59 = scmp.eq.s32.totalorder %s28, 1
      %p60 = por %p58, %p59
      %p61 = scmp.ne.s32.totalorder %s50, %s51
      %p62 = scmp.eq.s32.totalorder %s28, 0
      %p63 = por %p61, %p62
      %p64 = scmp.ne.s32.totalorder %s50, %s51
      %p65 = scmp.eq.s32.totalorder %s29, 1
      %p66 = por %p64, %p65
      %p68 = scmp.ne.s32.totalorder %s51, %s67
      %p69 = scmp.eq.s32.totalorder %s29, 0
      %p70 = por %p68, %p69
      %s72 = sadd.s32 %s71, 1
      %p75 = scmp.eq.s32.totalorder %s23, 1
      %p76 = scmp.ne.s32.totalorder %s71, %s73
      %p77 = scmp.eq.s32.totalorder %s23, 0
      %p78 = por %p76, %p77
      %p79 = scmp.ne.s32.totalorder %s71, %s73
      %p80 = scmp.eq.s32.totalorder %s28, 1
      %p81 = por %p79, %p80
      %p82 = scmp.ne.s32.totalorder %s73, %s74
      %p83 = scmp.eq.s32.totalorder %s28, 0
      %p84 = por %p82, %p83
      %p85 = scmp.ne.s32.totalorder %s73, %s74
      %p86 = scmp.eq.s32.totalorder %s29, 1
      %p87 = por %p85, %p86
      %p89 = scmp.ne.s32.totalorder %s74, %s88
      %p90 = scmp.eq.s32.totalorder %s29, 0
      %p91 = por %p89, %p90
      %s93 = sadd.s32 %s92, 1
      %p96 = scmp.eq.s32.totalorder %s23, 1
      %p97 = scmp.ne.s32.totalorder %s92, %s94
      %p98 = scmp.eq.s32.totalorder %s23, 0
      %p99 = por %p97, %p98
      %p100 = scmp.ne.s32.totalorder %s92, %s94
      %p101 = scmp.eq.s32.totalorder %s28, 1
      %p102 = por %p100, %p101
      %p103 = scmp.ne.s32.totalorder %s94, %s95
      %p104 = scmp.eq.s32.totalorder %s28, 0
      %p105 = por %p103, %p104
      %p106 = scmp.ne.s32.totalorder %s94, %s95
      %p107 = scmp.eq.s32.totalorder %s29, 1
      %p108 = por %p106, %p107
      %p110 = scmp.ne.s32.totalorder %s95, %s109
      %p111 = scmp.eq.s32.totalorder %s29, 0
      %p112 = por %p110, %p111
      %s114 = sadd.s32 %s113, 1
      %p117 = scmp.eq.s32.totalorder %s23, 1
      %p118 = scmp.ne.s32.totalorder %s113, %s115
      %p119 = scmp.eq.s32.totalorder %s23, 0
      %p120 = por %p118, %p119
      %p121 = scmp.ne.s32.totalorder %s113, %s115
      %p122 = scmp.eq.s32.totalorder %s28, 1
      %p123 = por %p121, %p122
      %p124 = scmp.ne.s32.totalorder %s115, %s116
      %p125 = scmp.eq.s32.totalorder %s28, 0
      %p126 = por %p124, %p125
      %p127 = scmp.ne.s32.totalorder %s115, %s116
      %p128 = scmp.eq.s32.totalorder %s29, 1
      %p129 = por %p127, %p128
      %p131 = scmp.ne.s32.totalorder %s116, %s130
      %p132 = scmp.eq.s32.totalorder %s29, 0
      %p133 = por %p131, %p132
      %s135 = sadd.s32 %s134, 1
      %p138 = scmp.eq.s32.totalorder %s23, 1
      %p139 = scmp.ne.s32.totalorder %s134, %s136
      %p140 = scmp.eq.s32.totalorder %s23, 0
      %p141 = por %p139, %p140
      %p142 = scmp.ne.s32.totalorder %s134, %s136
      %p143 = scmp.eq.s32.totalorder %s28, 1
      %p144 = por %p142, %p143
      %p145 = scmp.ne.s32.totalorder %s136, %s137
      %p146 = scmp.eq.s32.totalorder %s28, 0
      %p147 = por %p145, %p146
      %p148 = scmp.ne.s32.totalorder %s136, %s137
      %p149 = scmp.eq.s32.totalorder %s29, 1
      %p150 = por %p148, %p149
      %p152 = scmp.ne.s32.totalorder %s137, %s151
      %p153 = scmp.eq.s32.totalorder %s29, 0
      %p154 = por %p152, %p153
      %s155 = ssub.s32 %s30, %s42
      %s156 = ssub.s32 %s31, %s38
      %s157 = sor.u32 %s155, %s156
      %p158 = scmp.eq.s32.totalorder %s157, 0
      %s160 = sadd.s32 %s159, 1
      %s161 = scalar_select %p158, %s159, %s160
      %p164 = pneg %p158
      %p165 = scmp.eq.s32.totalorder %s23, 1
      %p166 = por %p164, %p165
      %p167 = scmp.ne.s32.totalorder %s159, %s162
      %p168 = scmp.eq.s32.totalorder %s23, 0
      %p169 = por %p167, %p168
      %p170 = scmp.ne.s32.totalorder %s159, %s162
      %p171 = scmp.eq.s32.totalorder %s28, 1
      %p172 = por %p170, %p171
      %p173 = scmp.ne.s32.totalorder %s162, %s163
      %p174 = scmp.eq.s32.totalorder %s28, 0
      %p175 = por %p173, %p174
      %p176 = scmp.ne.s32.totalorder %s162, %s163
      %p177 = scmp.eq.s32.totalorder %s29, 1
      %p178 = por %p176, %p177
      %p180 = scmp.ne.s32.totalorder %s163, %s179
      %p181 = scmp.eq.s32.totalorder %s29, 0
      %p182 = por %p180, %p181
      %s183 = ssub.s32 %s30, %s42
      %s184 = ssub.s32 %s31, %s38
      %s185 = sor.u32 %s183, %s184
      %p186 = scmp.eq.s32.totalorder %s185, 0
      %s188 = sadd.s32 %s187, 1
      %s189 = scalar_select %p186, %s187, %s188
      %p192 = pneg %p186
      %p193 = scmp.eq.s32.totalorder %s23, 1
      %p194 = por %p192, %p193
      %p195 = scmp.ne.s32.totalorder %s187, %s190
      %p196 = scmp.eq.s32.totalorder %s23, 0
      %p197 = por %p195, %p196
      %p198 = scmp.ne.s32.totalorder %s187, %s190
      %p199 = scmp.eq.s32.totalorder %s28, 1
      %p200 = por %p198, %p199
      %p201 = scmp.ne.s32.totalorder %s190, %s191
      %p202 = scmp.eq.s32.totalorder %s28, 0
      %p203 = por %p201, %p202
      %p204 = scmp.ne.s32.totalorder %s190, %s191
      %p205 = scmp.eq.s32.totalorder %s29, 1
      %p206 = por %p204, %p205
      %p208 = scmp.ne.s32.totalorder %s191, %s207
      %p209 = scmp.eq.s32.totalorder %s29, 0
      %p210 = por %p208, %p209
      %p211 = scmp.le.s32.totalorder 1, %s23
      %p212 = scmp.lt.s32.totalorder %s23, 3
      %p213 = pnand %p211, %p212
      %p214 = pneg %p213
      // Predicated region
      $region9: #{tpu_custom_call.1} parent=5 // pred_check
        _
      $region10: #{tpu_custom_call.1} parent=5 // pred_check_branch
        %216 = sbr.rel (%p213) target = $region12
      $region11: #{tpu_custom_call.1} parent=5 // pred_region
        %s217 = ssub.s32 %s23, 1
        // Predicated region
        $region13: #{tpu_custom_call.1} parent=11 // pred_check
          %p218 = pneg %p84
        $region14: #{tpu_custom_call.1} parent=11 // pred_check_branch
          %220 = sbr.rel (%p218) target = $region16
        $region15: #{tpu_custom_call.1} parent=11 // pred_region
          %222 = vsyncadd [#allocation6], 0
          %s224 = sshll.u32 %s1, 4
          %s225 = int_to_ptr.hbm [resolvable:$true] %s224
          %s226 = sshll.u32 [#allocation5], 4
          %s227 = int_to_ptr.vmem [resolvable:$true] %s226
          %229 = dma.hbm_to_vmem [thread:$0]  %s225, 16, %s227, [#allocation6]
        $region16: #{tpu_custom_call.1} parent=11 // pred_fallthru
          _
        // Predicated region
        $region17: #{tpu_custom_call.1} parent=11 // pred_check
          %p230 = pneg %p105
        $region18: #{tpu_custom_call.1} parent=11 // pred_check_branch
          %232 = sbr.rel (%p230) target = $region20
        $region19: #{tpu_custom_call.1} parent=11 // pred_region
          _
        $region20: #{tpu_custom_call.1} parent=11 // pred_fallthru
          _
        // Predicated region
        $region21: #{tpu_custom_call.1} parent=11 // pred_check
          %p233 = pneg %p126
        $region22: #{tpu_custom_call.1} parent=11 // pred_check_branch
          %235 = sbr.rel (%p233) target = $region24
        $region23: #{tpu_custom_call.1} parent=11 // pred_region
          %237 = vsyncadd [#allocation6], 0
          %s238 = sshll.u32 %s3, 4
          %s239 = int_to_ptr.hbm [resolvable:$true] %s238
          %s240 = sshll.u32 [#allocation7], 4
          %s241 = int_to_ptr.vmem [resolvable:$true] %s240
          %246 = dma.hbm_to_vmem [thread:$0]  %s239, 256, %s241, [#allocation6], 64, 64, 4
        $region24: #{tpu_custom_call.1} parent=11 // pred_fallthru
          _
        // Predicated region
        $region25: #{tpu_custom_call.1} parent=11 // pred_check
          %p247 = pneg %p147
        $region26: #{tpu_custom_call.1} parent=11 // pred_check_branch
          %249 = sbr.rel (%p247) target = $region28
        $region27: #{tpu_custom_call.1} parent=11 // pred_region
          _
        $region28: #{tpu_custom_call.1} parent=11 // pred_fallthru
          _
      $region12: #{tpu_custom_call.1} parent=5 // pred_fallthru
        _
      %p250 = scmp.lt.s32.totalorder %s23, 2
      // Predicated region
      $region29: #{tpu_custom_call.1} parent=5 // pred_check
        %p251 = pneg %p250
      $region30: #{tpu_custom_call.1} parent=5 // pred_check_branch
        %253 = sbr.rel (%p251) target = $region32
      $region31: #{tpu_custom_call.1} parent=5 // pred_region
        // Predicated region
        $region33: #{tpu_custom_call.1} parent=31 // pred_check
          %p254 = pneg %p57
        $region34: #{tpu_custom_call.1} parent=31 // pred_check_branch
          %256 = sbr.rel (%p254) target = $region36
        $region35: #{tpu_custom_call.1} parent=31 // pred_region
          %s257 = sand.u32 %s47, 1
          %s258 = scalar_lea.sflag [#allocation3], %s257
          %s259 = sand.u32 %s47, 1
          %s260 = smul.addr %s259, 8
          %s261 = scalar_lea.vmem [#allocation2], %s260
          %263 = vsyncadd %s258, 0
          %s264 = sadd.s32 %s31, %s30
          %s265 = smul.addr %s264, 8
          %s266 = scalar_lea.hbm %s0, %s265
          %s268 = sshll.u32 %s266, 4
          %s269 = int_to_ptr.hbm [resolvable:$true] %s268
          %s270 = sshll.u32 %s261, 4
          %s271 = int_to_ptr.vmem [resolvable:$true] %s270
          %273 = dma.hbm_to_vmem [thread:$0]  %s269, 128, %s271, %s258
        $region36: #{tpu_custom_call.1} parent=31 // pred_fallthru
          _
      $region32: #{tpu_custom_call.1} parent=5 // pred_fallthru
        _
      %p274 = scmp.le.s32.totalorder 1, %s23
      %p275 = scmp.lt.s32.totalorder %s23, 3
      %p276 = pnand %p274, %p275
      %p277 = pneg %p276
      // Predicated region
      $region37: #{tpu_custom_call.1} parent=5 // pred_check
        _
      $region38: #{tpu_custom_call.1} parent=5 // pred_check_branch
        %279 = sbr.rel (%p276) target = $region40
      $region39: #{tpu_custom_call.1} parent=5 // pred_region
        %s280 = ssub.s32 %s23, 1
        %s281 = sand.u32 %s50, 1
        %s282 = scalar_lea.sflag [#allocation3], %s281
        %s283 = sand.u32 %s50, 1
        %s284 = smul.addr %s283, 8
        %s285 = scalar_lea.vmem [#allocation2], %s284
        // Predicated region
        $region41: #{tpu_custom_call.1} parent=39 // pred_check
          %p286 = pneg %p63
        $region42: #{tpu_custom_call.1} parent=39 // pred_check_branch
          %288 = sbr.rel (%p286) target = $region44
        $region43: #{tpu_custom_call.1} parent=39 // pred_region
          %290 = dma.done %s282, 128
        $region44: #{tpu_custom_call.1} parent=39 // pred_fallthru
          _
        // Predicated region
        $region45: #{tpu_custom_call.1} parent=39 // pred_check
          %p291 = pneg %p84
        $region46: #{tpu_custom_call.1} parent=39 // pred_check_branch
          %293 = sbr.rel (%p291) target = $region48
        $region47: #{tpu_custom_call.1} parent=39 // pred_region
          %295 = dma.done [#allocation6], 16
        $region48: #{tpu_custom_call.1} parent=39 // pred_fallthru
          _
        // Predicated region
        $region49: #{tpu_custom_call.1} parent=39 // pred_check
          %p296 = pneg %p126
        $region50: #{tpu_custom_call.1} parent=39 // pred_check_branch
          %298 = sbr.rel (%p296) target = $region52
        $region51: #{tpu_custom_call.1} parent=39 // pred_region
          %300 = dma.done [#allocation6], 256
        $region52: #{tpu_custom_call.1} parent=39 // pred_fallthru
          _
        %s301 = sand.u32 %s50, 1
        %s302 = scalar_lea.sflag [#allocation3], %s301
        %s303 = sand.u32 %s50, 1
        %s304 = smul.addr %s303, 8
        %s305 = scalar_lea.vmem [#allocation2], %s304
        %p306 = pneg %p63
        %p307 = pneg %p60
        %p308 = pneg %p84
        %p309 = pneg %p81
        %p310 = pneg %p105
        %p311 = pneg %p102
        %p312 = pneg %p126
        %p313 = pneg %p123
        %p314 = pneg %p147
        %p315 = pneg %p144
        %p316 = pneg %p175
        %p317 = pneg %p172
        %s318 = sand.u32 %s162, 1
        %s319 = scalar_lea.sflag [#allocation4], %s318
        %s320 = sand.u32 %s162, 1
        %s321 = smul.addr %s320, 4
        %s322 = scalar_lea.vmem [#allocation8], %s321
        %p323 = pneg %p203
        %p324 = pneg %p200
        %s325 = sand.u32 %s190, 1
        %s326 = scalar_lea.sflag [#allocation10], %s325
        %s327 = sand.u32 %s190, 1
        %s328 = smul.addr %s327, 4
        %s329 = scalar_lea.vmem [#allocation9], %s328
        %v331 = vld [vmem:[%s285] sm:$0xff]
        %v332 = vld [vmem:[#allocation5] sm:$0x1]
        %v333 = vld [vmem:[%s2] sm:$0x1]
        %vm334 = vcmask 261120
        %v335 = vsel %vm334, %v331, 0.0
        %336 = vadd.xlane.f32.xlu0 %v335
        %v337 = vpop.xlane.xlu0 %336
        %v338 = vrcp.pop 32.0
        %v339 = vmul.f32 32.0, %v338
        %v340 = vsub.f32 1.0, %v339
        %v341 = vmul.f32 %v338, %v340
        %v342 = vadd.f32 %v338, %v341
        %vm343 = vweird.f32 %v338
        %v344 = vsel %vm343, %v338, %v342
        %v345 = vmul.f32 %v337, %v344
        %v346 = vsub.f32 %v331, %v345
        %v347 = vmul.f32 %v346, %v346
        %v348 = vsel %vm334, %v347, 0.0
        %349 = vadd.xlane.f32.xlu0 %v348
        %v350 = vpop.xlane.xlu0 %349
        %v351 = vmul.f32 %v350, %v344
        %v352 = vadd.f32 %v351, 1e-05
        %v353 = vrsqrt.pop %v352
        %v354 = vmul.f32 %v353, %v352
        %v355 = vmul.f32 %v354, %v353
        %v356 = vmul.f32 0.5, %v355
        %v357 = vsub.f32 1.5, %v356
        %v358 = vmul.f32 %v353, %v357
        %vm359 = vweird.f32 %v352
        %vm360 = vweird.f32 %v353
        %vm361 = vmor %vm359, %vm360
        %v362 = vsel %vm361, %v353, %v358
        %v363 = vmul.f32 %v346, %v362
        %v365 = vperm.slane %v332, 0
        %v367 = vmul.f32 %v363, %v365
        %v369 = vperm.slane %v333, 0
        %v371 = vadd.f32 %v367, %v369
        %v372 = vpack.c.bf16 %v371, %v371
        %v373 = vld [vmem:[#allocation7] sm:$0xf]
        %v374 = vld [vmem:[#allocation7 + $0x4] sm:$0xf]
        %v375 = vld [vmem:[#allocation7 + $0x8] sm:$0xf]
        %v376 = vld [vmem:[#allocation7 + $0xc] sm:$0xf]
        %v377 = vld [vmem:[%s4] sm:$0x1]
        %v379 = vperm.slane %v377, 0
        %v385 = vunpack.c.l.b16 %v373
        %v386 = vunpack.c.l.b16 %v374
        %v387 = vunpack.c.l.b16 %v375
        %v388 = vunpack.c.l.b16 %v376
        %v389 = vpack.c.b16 %v386, %v385
        %v390 = vpack.c.b16 %v388, %v387
        %v394 = vsel %vm334, %v372, 0
        %396 = vmatpush.bf16.msra.mxu0 0
        %397 = vmatpush.bf16.msra.mxu0 0
        %398 = vmatpush.bf16.msra.mxu0 0
        %399 = vmatpush.bf16.msra.mxu0 0
        %400 = vmatpush.bf16.msra.mxu0 0
        %401 = vmatpush.bf16.msra.mxu0 0
        %402 = vmatpush.bf16.msra.mxu0 %v390
        %403 = vmatpush.bf16.msra.mxu0 %v389
        %404 = vmatmul.bf16.gmra.mxu0 %v394
        %v405 = vpop.f32.mrf.mxu0
        %v406 = vadd.f32 %v379, %v405
        %v407 = vpop.f32.mrf.mxu0
        %408 = vdwg.mxu0
        %v409 = vpack.c.bf16 %v406, %v406
        %vm410 = vcmask 257024
        %411 = vst.msk [vmem:[%s322] sm:$0xf] %vm410, %v409
        %413 = vrot.lane.b32.xlu0 %v409, 96
        %v414 = vpop.permute.xlu0 %413
        %416 = vst.msk [vmem:[%s329] sm:$0xf] %vm410, %v414
        %s417 = sand.u32 %s162, 1
        %s418 = scalar_lea.sflag [#allocation4], %s417
        %s419 = sand.u32 %s162, 1
        %s420 = smul.addr %s419, 4
        %s421 = scalar_lea.vmem [#allocation8], %s420
        %s422 = sand.u32 %s190, 1
        %s423 = scalar_lea.sflag [#allocation10], %s422
        %s424 = sand.u32 %s190, 1
        %s425 = smul.addr %s424, 4
        %s426 = scalar_lea.vmem [#allocation9], %s425
        // Predicated region
        $region53: #{tpu_custom_call.1} parent=39 // pred_check
          %p427 = pneg %p172
        $region54: #{tpu_custom_call.1} parent=39 // pred_check_branch
          %429 = sbr.rel (%p427) target = $region56
        $region55: #{tpu_custom_call.1} parent=39 // pred_region
          %431 = vsyncadd %s418, 0
          %s432 = sadd.s32 %s33, %s32
          %s433 = smul.addr %s432, 4
          %s434 = scalar_lea.hbm %s5, %s433
          %s436 = sshll.u32 %s421, 4
          %s437 = int_to_ptr.vmem [resolvable:$true] %s436
          %s438 = sshll.u32 %s434, 4
          %s439 = int_to_ptr.hbm [resolvable:$true] %s438
          %441 = dma.vmem_to_hbm [thread:$0]  %s437, 64, %s439, %s418
        $region56: #{tpu_custom_call.1} parent=39 // pred_fallthru
          _
        // Predicated region
        $region57: #{tpu_custom_call.1} parent=39 // pred_check
          %p442 = pneg %p200
        $region58: #{tpu_custom_call.1} parent=39 // pred_check_branch
          %444 = sbr.rel (%p442) target = $region60
        $region59: #{tpu_custom_call.1} parent=39 // pred_region
          %446 = vsyncadd %s423, 0
          %s447 = sadd.s32 %s33, %s32
          %s448 = smul.addr %s447, 4
          %s449 = scalar_lea.hbm %s6, %s448
          %s451 = sshll.u32 %s426, 4
          %s452 = int_to_ptr.vmem [resolvable:$true] %s451
          %s453 = sshll.u32 %s449, 4
          %s454 = int_to_ptr.hbm [resolvable:$true] %s453
          %456 = dma.vmem_to_hbm [thread:$0]  %s452, 64, %s454, %s423
        $region60: #{tpu_custom_call.1} parent=39 // pred_fallthru
          _
      $region40: #{tpu_custom_call.1} parent=5 // pred_fallthru
        _
      %p457 = scmp.le.s32.totalorder 2, %s23
      // Predicated region
      $region61: #{tpu_custom_call.1} parent=5 // pred_check
        %p458 = pneg %p457
      $region62: #{tpu_custom_call.1} parent=5 // pred_check_branch
        %460 = sbr.rel (%p458) target = $region64
      $region63: #{tpu_custom_call.1} parent=5 // pred_region
        %s461 = ssub.s32 %s23, 2
        // Predicated region
        $region65: #{tpu_custom_call.1} parent=63 // pred_check
          %p462 = pneg %p178
        $region66: #{tpu_custom_call.1} parent=63 // pred_check_branch
          %464 = sbr.rel (%p462) target = $region68
        $region67: #{tpu_custom_call.1} parent=63 // pred_region
          %s465 = sand.u32 %s163, 1
          %s466 = scalar_lea.sflag [#allocation4], %s465
          %s467 = sand.u32 %s163, 1
          %s468 = smul.addr %s467, 4
          %s469 = scalar_lea.vmem [#allocation8], %s468
          %471 = dma.done %s466, 64
        $region68: #{tpu_custom_call.1} parent=63 // pred_fallthru
          _
        // Predicated region
        $region69: #{tpu_custom_call.1} parent=63 // pred_check
          %p472 = pneg %p206
        $region70: #{tpu_custom_call.1} parent=63 // pred_check_branch
          %474 = sbr.rel (%p472) target = $region72
        $region71: #{tpu_custom_call.1} parent=63 // pred_region
          %s475 = sand.u32 %s191, 1
          %s476 = scalar_lea.sflag [#allocation10], %s475
          %s477 = sand.u32 %s191, 1
          %s478 = smul.addr %s477, 4
          %s479 = scalar_lea.vmem [#allocation9], %s478
          %481 = dma.done %s476, 64
        $region72: #{tpu_custom_call.1} parent=63 // pred_fallthru
          _
      $region64: #{tpu_custom_call.1} parent=5 // pred_fallthru
        _
    $region6: #{tpu_custom_call.1} parent=1 // loop_footer
      %s27 = sadd.s32 1, %s23
    $region7: #{tpu_custom_call.1} parent=1 // loop_footer_branch
      %22 = sbr.rel target = $region3
    $region8: #{tpu_custom_call.1} parent=1 // loop_exit
      _
    %482 = vsyncpa [#allocation3], 1
    %s483 = scalar_lea.sflag [#allocation3], 1
    %484 = vsyncpa %s483, 1
    %485 = vsyncpa [#allocation6], 1
    %486 = vsyncpa [#allocation4], 1
    %s487 = scalar_lea.sflag [#allocation4], 1
    %488 = vsyncpa %s487, 1
    %489 = vsyncpa [#allocation10], 1
    %s490 = scalar_lea.sflag [#allocation10], 1
    %491 = vsyncpa %s490, 1

// kernel: tpu_custom_call.1
$region0: #{tpu_custom_call.1}
  #allocation0 [shape = 'u32[]', space=smem, size = 0x4, offset = 0x4, fixed_abs, tag = 'smem constant byte address 0x4 - core index']
  #allocation1 [shape = 'u32[72,128]{1,0:T(1,128)}', space=vmem, size = 0x9000, scoped, tag = 'internal scratch']
  %s0 = inlined_call_operand.hbm [shape: f32[2,8,32], index: 0, kind: input, shape index: {}]
  %s1 = inlined_call_operand.hbm [shape: f32[1,32], index: 1, kind: input, shape index: {}]
  %s2 = inlined_call_operand.vmem [shape: f32[1,32], index: 2, kind: input, shape index: {}]
  %s3 = inlined_call_operand.hbm [shape: bf16[32,64], index: 3, kind: input, shape index: {}]
  %s4 = inlined_call_operand.vmem [shape: f32[1,64], index: 4, kind: input, shape index: {}]
  %s5 = inlined_call_operand.hbm [shape: bf16[2,8,32], index: 5, kind: output, shape index: {0}]
  %s6 = inlined_call_operand.hbm [shape: bf16[2,8,32], index: 6, kind: output, shape index: {1}]
  %7 = xla_tuple %s5, %s6
  %s8 = sld [smem:[#allocation0]]
  $region73: #{tpu_custom_call.1} parent=0
    _
  %s10 = ssub.s32 1, %s8
  %s11 = scalar_select 0, %s10, %s8
  $region1: #{tpu_custom_call.1} parent=0
    #allocation2 [shape = 'u8[8192]{0}', space=vmem, size = 0x2000, scoped, tag = 'input window, operand 0']
    #allocation3 [shape = 's32[2]{0}', space=sflag, size = 0x8, scoped, tag = 'scoped memory for tpu_custom_call.1']
    #allocation4 [shape = 's32[2]{0}', space=sflag, size = 0x8, scoped, tag = 'scoped memory for tpu_custom_call.1']
    #allocation5 [shape = 'u8[512]{0}', space=vmem, size = 0x400, scoped, tag = 'input window, operand 1, single buffered']
    #allocation6 [shape = 's32[1]{0}', space=sflag, size = 0x4, scoped, tag = 'scoped memory for tpu_custom_call.1']
    #allocation7 [shape = 'u8[8192]{0}', space=vmem, size = 0x2000, scoped, tag = 'input window, operand 3, single buffered']
    #allocation8 [shape = 'u8[4096]{0}', space=vmem, size = 0x1000, scoped, tag = 'output window, operand 0']
    #allocation9 [shape = 'u8[4096]{0}', space=vmem, size = 0x1000, scoped, tag = 'output window, operand 1']
    #allocation10 [shape = 's32[2]{0}', space=sflag, size = 0x8, scoped, tag = 'scoped memory for tpu_custom_call.1']
    %12 = vsyncpa [#allocation3], 0
    %s13 = scalar_lea.sflag [#allocation3], 1
    %14 = vsyncpa %s13, 0
    %15 = vsyncpa [#allocation6], 0
    %16 = vsyncpa [#allocation4], 0
    %s17 = scalar_lea.sflag [#allocation4], 1
    %18 = vsyncpa %s17, 0
    %19 = vsyncpa [#allocation10], 0
    %s20 = scalar_lea.sflag [#allocation10], 1
    %21 = vsyncpa %s20, 0
    loop: start=0, step=1, limit=4
    $region2: #{tpu_custom_call.1} parent=1 // loop_pre_header
      _
    $region3: #{tpu_custom_call.1} parent=1 // loop_header
      %s23 = sphi 0, %s27
      %p24 = scmp.ge.s32.totalorder %s23, 4
      %s30 = sphi 0, %s42
      %s31 = sphi 0, %s38
      %s32 = sphi 0, %s30
      %s33 = sphi 0, %s31
      %s34 = sphi 0, %s32
      %s35 = sphi 0, %s33
      %s47 = sphi 0, %s49
      %s50 = sphi 0, %s47
      %s51 = sphi 0, %s50
      %s67 = sphi 0, %s51
      %s71 = sphi 0, %s71
      %s73 = sphi 0, %s71
      %s74 = sphi 0, %s73
      %s88 = sphi 0, %s74
      %s92 = sphi 0, %s92
      %s94 = sphi 0, %s92
      %s95 = sphi 0, %s94
      %s109 = sphi 0, %s95
      %s113 = sphi 0, %s113
      %s115 = sphi 0, %s113
      %s116 = sphi 0, %s115
      %s130 = sphi 0, %s116
      %s134 = sphi 0, %s134
      %s136 = sphi 0, %s134
      %s137 = sphi 0, %s136
      %s151 = sphi 0, %s137
      %s159 = sphi 0, %s161
      %s162 = sphi 0, %s159
      %s163 = sphi 0, %s162
      %s179 = sphi 0, %s163
      %s187 = sphi 0, %s189
      %s190 = sphi 0, %s187
      %s191 = sphi 0, %s190
      %s207 = sphi 0, %s191
    $region4: #{tpu_custom_call.1} parent=1 // loop_header_branch
      %26 = sbr.rel (%p24) target = $region8
    $region5: #{tpu_custom_call.1} parent=1 // loop_body
      %s28 = ssub.s32 %s23, 1
      %s29 = ssub.s32 %s23, 2
      %s36 = sadd.s32 1, %s31
      %p37 = scmp.ge.s32.totalorder %s36, 1
      %s38 = scalar_select %p37, 0, %s36
      %s39 = sadd.s32 1, %s30
      %s40 = scalar_select %p37, %s39, %s30
      %p41 = scmp.ge.s32.totalorder %s40, 2
      %s42 = scalar_select %p41, 0, %s40
      %s43 = ssub.s32 %s30, %s42
      %s44 = ssub.s32 %s31, %s38
      %s45 = sor.u32 %s43, %s44
      %p46 = scmp.eq.s32.totalorder %s45, 0
      %s48 = sadd.s32 %s47, 1
      %s49 = scalar_select %p46, %s47, %s48
      %p52 = pneg %p46
      %p53 = scmp.eq.s32.totalorder %s23, 1
      %p54 = por %p52, %p53
      %p55 = scmp.ne.s32.totalorder %s47, %s50
      %p56 = scmp.eq.s32.totalorder %s23, 0
      %p57 = por %p55, %p56
      %p58 = scmp.ne.s32.totalorder %s47, %s50
      %p59 = scmp.eq.s32.totalorder %s28, 1
      %p60 = por %p58, %p59
      %p61 = scmp.ne.s32.totalorder %s50, %s51
      %p62 = scmp.eq.s32.totalorder %s28, 0
      %p63 = por %p61, %p62
      %p64 = scmp.ne.s32.totalorder %s50, %s51
      %p65 = scmp.eq.s32.totalorder %s29, 1
      %p66 = por %p64, %p65
      %p68 = scmp.ne.s32.totalorder %s51, %s67
      %p69 = scmp.eq.s32.totalorder %s29, 0
      %p70 = por %p68, %p69
      %s72 = sadd.s32 %s71, 1
      %p75 = scmp.eq.s32.totalorder %s23, 1
      %p76 = scmp.ne.s32.totalorder %s71, %s73
      %p77 = scmp.eq.s32.totalorder %s23, 0
      %p78 = por %p76, %p77
      %p79 = scmp.ne.s32.totalorder %s71, %s73
      %p80 = scmp.eq.s32.totalorder %s28, 1
      %p81 = por %p79, %p80
      %p82 = scmp.ne.s32.totalorder %s73, %s74
      %p83 = scmp.eq.s32.totalorder %s28, 0
      %p84 = por %p82, %p83
      %p85 = scmp.ne.s32.totalorder %s73, %s74
      %p86 = scmp.eq.s32.totalorder %s29, 1
      %p87 = por %p85, %p86
      %p89 = scmp.ne.s32.totalorder %s74, %s88
      %p90 = scmp.eq.s32.totalorder %s29, 0
      %p91 = por %p89, %p90
      %s93 = sadd.s32 %s92, 1
      %p96 = scmp.eq.s32.totalorder %s23, 1
      %p97 = scmp.ne.s32.totalorder %s92, %s94
      %p98 = scmp.eq.s32.totalorder %s23, 0
      %p99 = por %p97, %p98
      %p100 = scmp.ne.s32.totalorder %s92, %s94
      %p101 = scmp.eq.s32.totalorder %s28, 1
      %p102 = por %p100, %p101
      %p103 = scmp.ne.s32.totalorder %s94, %s95
      %p104 = scmp.eq.s32.totalorder %s28, 0
      %p105 = por %p103, %p104
      %p106 = scmp.ne.s32.totalorder %s94, %s95
      %p107 = scmp.eq.s32.totalorder %s29, 1
      %p108 = por %p106, %p107
      %p110 = scmp.ne.s32.totalorder %s95, %s109
      %p111 = scmp.eq.s32.totalorder %s29, 0
      %p112 = por %p110, %p111
      %s114 = sadd.s32 %s113, 1
      %p117 = scmp.eq.s32.totalorder %s23, 1
      %p118 = scmp.ne.s32.totalorder %s113, %s115
      %p119 = scmp.eq.s32.totalorder %s23, 0
      %p120 = por %p118, %p119
      %p121 = scmp.ne.s32.totalorder %s113, %s115
      %p122 = scmp.eq.s32.totalorder %s28, 1
      %p123 = por %p121, %p122
      %p124 = scmp.ne.s32.totalorder %s115, %s116
      %p125 = scmp.eq.s32.totalorder %s28, 0
      %p126 = por %p124, %p125
      %p127 = scmp.ne.s32.totalorder %s115, %s116
      %p128 = scmp.eq.s32.totalorder %s29, 1
      %p129 = por %p127, %p128
      %p131 = scmp.ne.s32.totalorder %s116, %s130
      %p132 = scmp.eq.s32.totalorder %s29, 0
      %p133 = por %p131, %p132
      %s135 = sadd.s32 %s134, 1
      %p138 = scmp.eq.s32.totalorder %s23, 1
      %p139 = scmp.ne.s32.totalorder %s134, %s136
      %p140 = scmp.eq.s32.totalorder %s23, 0
      %p141 = por %p139, %p140
      %p142 = scmp.ne.s32.totalorder %s134, %s136
      %p143 = scmp.eq.s32.totalorder %s28, 1
      %p144 = por %p142, %p143
      %p145 = scmp.ne.s32.totalorder %s136, %s137
      %p146 = scmp.eq.s32.totalorder %s28, 0
      %p147 = por %p145, %p146
      %p148 = scmp.ne.s32.totalorder %s136, %s137
      %p149 = scmp.eq.s32.totalorder %s29, 1
      %p150 = por %p148, %p149
      %p152 = scmp.ne.s32.totalorder %s137, %s151
      %p153 = scmp.eq.s32.totalorder %s29, 0
      %p154 = por %p152, %p153
      %s155 = ssub.s32 %s30, %s42
      %s156 = ssub.s32 %s31, %s38
      %s157 = sor.u32 %s155, %s156
      %p158 = scmp.eq.s32.totalorder %s157, 0
      %s160 = sadd.s32 %s159, 1
      %s161 = scalar_select %p158, %s159, %s160
      %p164 = pneg %p158
      %p165 = scmp.eq.s32.totalorder %s23, 1
      %p166 = por %p164, %p165
      %p167 = scmp.ne.s32.totalorder %s159, %s162
      %p168 = scmp.eq.s32.totalorder %s23, 0
      %p169 = por %p167, %p168
      %p170 = scmp.ne.s32.totalorder %s159, %s162
      %p171 = scmp.eq.s32.totalorder %s28, 1
      %p172 = por %p170, %p171
      %p173 = scmp.ne.s32.totalorder %s162, %s163
      %p174 = scmp.eq.s32.totalorder %s28, 0
      %p175 = por %p173, %p174
      %p176 = scmp.ne.s32.totalorder %s162, %s163
      %p177 = scmp.eq.s32.totalorder %s29, 1
      %p178 = por %p176, %p177
      %p180 = scmp.ne.s32.totalorder %s163, %s179
      %p181 = scmp.eq.s32.totalorder %s29, 0
      %p182 = por %p180, %p181
      %s183 = ssub.s32 %s30, %s42
      %s184 = ssub.s32 %s31, %s38
      %s185 = sor.u32 %s183, %s184
      %p186 = scmp.eq.s32.totalorder %s185, 0
      %s188 = sadd.s32 %s187, 1
      %s189 = scalar_select %p186, %s187, %s188
      %p192 = pneg %p186
      %p193 = scmp.eq.s32.totalorder %s23, 1
      %p194 = por %p192, %p193
      %p195 = scmp.ne.s32.totalorder %s187, %s190
      %p196 = scmp.eq.s32.totalorder %s23, 0
      %p197 = por %p195, %p196
      %p198 = scmp.ne.s32.totalorder %s187, %s190
      %p199 = scmp.eq.s32.totalorder %s28, 1
      %p200 = por %p198, %p199
      %p201 = scmp.ne.s32.totalorder %s190, %s191
      %p202 = scmp.eq.s32.totalorder %s28, 0
      %p203 = por %p201, %p202
      %p204 = scmp.ne.s32.totalorder %s190, %s191
      %p205 = scmp.eq.s32.totalorder %s29, 1
      %p206 = por %p204, %p205
      %p208 = scmp.ne.s32.totalorder %s191, %s207
      %p209 = scmp.eq.s32.totalorder %s29, 0
      %p210 = por %p208, %p209
      %p211 = scmp.le.s32.totalorder 1, %s23
      %p212 = scmp.lt.s32.totalorder %s23, 3
      %p213 = pnand %p211, %p212
      %p214 = pneg %p213
      // Predicated region
      $region9: #{tpu_custom_call.1} parent=5 // pred_check
        _
      $region10: #{tpu_custom_call.1} parent=5 // pred_check_branch
        %216 = sbr.rel (%p213) target = $region12
      $region11: #{tpu_custom_call.1} parent=5 // pred_region
        %s217 = ssub.s32 %s23, 1
        // Predicated region
        $region13: #{tpu_custom_call.1} parent=11 // pred_check
          %p218 = pneg %p84
        $region14: #{tpu_custom_call.1} parent=11 // pred_check_branch
          %220 = sbr.rel (%p218) target = $region16
        $region15: #{tpu_custom_call.1} parent=11 // pred_region
          %222 = vsyncadd [#allocation6], 0
          %s224 = sshll.u32 %s1, 4
          %s225 = int_to_ptr.hbm [resolvable:$true] %s224
          %s226 = sshll.u32 [#allocation5], 4
          %s227 = int_to_ptr.vmem [resolvable:$true] %s226
          %229 = dma.hbm_to_vmem [thread:$0]  %s225, 16, %s227, [#allocation6]
        $region16: #{tpu_custom_call.1} parent=11 // pred_fallthru
          _
        // Predicated region
        $region17: #{tpu_custom_call.1} parent=11 // pred_check
          %p230 = pneg %p105
        $region18: #{tpu_custom_call.1} parent=11 // pred_check_branch
          %232 = sbr.rel (%p230) target = $region20
        $region19: #{tpu_custom_call.1} parent=11 // pred_region
          _
        $region20: #{tpu_custom_call.1} parent=11 // pred_fallthru
          _
        // Predicated region
        $region21: #{tpu_custom_call.1} parent=11 // pred_check
          %p233 = pneg %p126
        $region22: #{tpu_custom_call.1} parent=11 // pred_check_branch
          %235 = sbr.rel (%p233) target = $region24
        $region23: #{tpu_custom_call.1} parent=11 // pred_region
          %237 = vsyncadd [#allocation6], 0
          %s238 = sshll.u32 %s3, 4
          %s239 = int_to_ptr.hbm [resolvable:$true] %s238
          %s240 = sshll.u32 [#allocation7], 4
          %s241 = int_to_ptr.vmem [resolvable:$true] %s240
          %246 = dma.hbm_to_vmem [thread:$0]  %s239, 256, %s241, [#allocation6], 64, 64, 4
        $region24: #{tpu_custom_call.1} parent=11 // pred_fallthru
          _
        // Predicated region
        $region25: #{tpu_custom_call.1} parent=11 // pred_check
          %p247 = pneg %p147
        $region26: #{tpu_custom_call.1} parent=11 // pred_check_branch
          %249 = sbr.rel (%p247) target = $region28
        $region27: #{tpu_custom_call.1} parent=11 // pred_region
          _
        $region28: #{tpu_custom_call.1} parent=11 // pred_fallthru
          _
      $region12: #{tpu_custom_call.1} parent=5 // pred_fallthru
        _
      %p250 = scmp.lt.s32.totalorder %s23, 2
      // Predicated region
      $region29: #{tpu_custom_call.1} parent=5 // pred_check
        %p251 = pneg %p250
      $region30: #{tpu_custom_call.1} parent=5 // pred_check_branch
        %253 = sbr.rel (%p251) target = $region32
      $region31: #{tpu_custom_call.1} parent=5 // pred_region
        // Predicated region
        $region33: #{tpu_custom_call.1} parent=31 // pred_check
          %p254 = pneg %p57
        $region34: #{tpu_custom_call.1} parent=31 // pred_check_branch
          %256 = sbr.rel (%p254) target = $region36
        $region35: #{tpu_custom_call.1} parent=31 // pred_region
          %s257 = sand.u32 %s47, 1
          %s258 = scalar_lea.sflag [#allocation3], %s257
          %s259 = sand.u32 %s47, 1
          %s260 = smul.addr %s259, 8
          %s261 = scalar_lea.vmem [#allocation2], %s260
          %263 = vsyncadd %s258, 0
          %s264 = sadd.s32 %s31, %s30
          %s265 = smul.addr %s264, 8
          %s266 = scalar_lea.hbm %s0, %s265
          %s268 = sshll.u32 %s266, 4
          %s269 = int_to_ptr.hbm [resolvable:$true] %s268
          %s270 = sshll.u32 %s261, 4
          %s271 = int_to_ptr.vmem [resolvable:$true] %s270
          %273 = dma.hbm_to_vmem [thread:$0]  %s269, 128, %s271, %s258
        $region36: #{tpu_custom_call.1} parent=31 // pred_fallthru
          _
      $region32: #{tpu_custom_call.1} parent=5 // pred_fallthru
        _
      %p274 = scmp.le.s32.totalorder 1, %s23
      %p275 = scmp.lt.s32.totalorder %s23, 3
      %p276 = pnand %p274, %p275
      %p277 = pneg %p276
      // Predicated region
      $region37: #{tpu_custom_call.1} parent=5 // pred_check
        _
      $region38: #{tpu_custom_call.1} parent=5 // pred_check_branch
        %279 = sbr.rel (%p276) target = $region40
      $region39: #{tpu_custom_call.1} parent=5 // pred_region
        %s280 = ssub.s32 %s23, 1
        %s281 = sand.u32 %s50, 1
        %s282 = scalar_lea.sflag [#allocation3], %s281
        %s283 = sand.u32 %s50, 1
        %s284 = smul.addr %s283, 8
        %s285 = scalar_lea.vmem [#allocation2], %s284
        // Predicated region
        $region41: #{tpu_custom_call.1} parent=39 // pred_check
          %p286 = pneg %p63
        $region42: #{tpu_custom_call.1} parent=39 // pred_check_branch
          %288 = sbr.rel (%p286) target = $region44
        $region43: #{tpu_custom_call.1} parent=39 // pred_region
          %290 = dma.done %s282, 128
        $region44: #{tpu_custom_call.1} parent=39 // pred_fallthru
          _
        // Predicated region
        $region45: #{tpu_custom_call.1} parent=39 // pred_check
          %p291 = pneg %p84
        $region46: #{tpu_custom_call.1} parent=39 // pred_check_branch
          %293 = sbr.rel (%p291) target = $region48
        $region47: #{tpu_custom_call.1} parent=39 // pred_region
          %295 = dma.done [#allocation6], 16
        $region48: #{tpu_custom_call.1} parent=39 // pred_fallthru
          _
        // Predicated region
        $region49: #{tpu_custom_call.1} parent=39 // pred_check
          %p296 = pneg %p126
        $region50: #{tpu_custom_call.1} parent=39 // pred_check_branch
          %298 = sbr.rel (%p296) target = $region52
        $region51: #{tpu_custom_call.1} parent=39 // pred_region
          %300 = dma.done [#allocation6], 256
        $region52: #{tpu_custom_call.1} parent=39 // pred_fallthru
          _
        %s301 = sand.u32 %s50, 1
        %s302 = scalar_lea.sflag [#allocation3], %s301
        %s303 = sand.u32 %s50, 1
        %s304 = smul.addr %s303, 8
        %s305 = scalar_lea.vmem [#allocation2], %s304
        %p306 = pneg %p63
        %p307 = pneg %p60
        %p308 = pneg %p84
        %p309 = pneg %p81
        %p310 = pneg %p105
        %p311 = pneg %p102
        %p312 = pneg %p126
        %p313 = pneg %p123
        %p314 = pneg %p147
        %p315 = pneg %p144
        %p316 = pneg %p175
        %p317 = pneg %p172
        %s318 = sand.u32 %s162, 1
        %s319 = scalar_lea.sflag [#allocation4], %s318
        %s320 = sand.u32 %s162, 1
        %s321 = smul.addr %s320, 4
        %s322 = scalar_lea.vmem [#allocation8], %s321
        %p323 = pneg %p203
        %p324 = pneg %p200
        %s325 = sand.u32 %s190, 1
        %s326 = scalar_lea.sflag [#allocation10], %s325
        %s327 = sand.u32 %s190, 1
        %s328 = smul.addr %s327, 4
        %s329 = scalar_lea.vmem [#allocation9], %s328
        %v331 = vld [vmem:[%s285] sm:$0xff]
        %v332 = vld [vmem:[#allocation5] sm:$0x1]
        %v333 = vld [vmem:[%s2] sm:$0x1]
        %vm334 = vcmask 261120
        %v335 = vsel %vm334, %v331, 0.0
        %336 = vadd.xlane.f32.xlu0 %v335
        %v337 = vpop.xlane.xlu0 %336
        %v338 = vrcp.pop 32.0
        %v339 = vmul.f32 32.0, %v338
        %v340 = vsub.f32 1.0, %v339
        %v341 = vmul.f32 %v338, %v340
        %v342 = vadd.f32 %v338, %v341
        %vm343 = vweird.f32 %v338
        %v344 = vsel %vm343, %v338, %v342
        %v345 = vmul.f32 %v337, %v344
        %v346 = vsub.f32 %v331, %v345
        %v347 = vmul.f32 %v346, %v346
        %v348 = vsel %vm334, %v347, 0.0
        %349 = vadd.xlane.f32.xlu0 %v348
        %v350 = vpop.xlane.xlu0 %349
        %v351 = vmul.f32 %v350, %v344
        %v352 = vadd.f32 %v351, 1e-05
        %v353 = vrsqrt.pop %v352
        %v354 = vmul.f32 %v353, %v352
        %v355 = vmul.f32 %v354, %v353
        %v356 = vmul.f32 0.5, %v355
        %v357 = vsub.f32 1.5, %v356
        %v358 = vmul.f32 %v353, %v357
        %vm359 = vweird.f32 %v352
        %vm360 = vweird.f32 %v353
        %vm361 = vmor %vm359, %vm360
        %v362 = vsel %vm361, %v353, %v358
        %v363 = vmul.f32 %v346, %v362
        %v365 = vperm.slane %v332, 0
        %v367 = vmul.f32 %v363, %v365
        %v369 = vperm.slane %v333, 0
        %v371 = vadd.f32 %v367, %v369
        %v372 = vpack.c.bf16 %v371, %v371
        %v373 = vld [vmem:[#allocation7] sm:$0xf]
        %v374 = vld [vmem:[#allocation7 + $0x4] sm:$0xf]
        %v375 = vld [vmem:[#allocation7 + $0x8] sm:$0xf]
        %v376 = vld [vmem:[#allocation7 + $0xc] sm:$0xf]
        %v377 = vld [vmem:[%s4] sm:$0x1]
        %v379 = vperm.slane %v377, 0
        %v385 = vunpack.c.l.b16 %v373
        %v386 = vunpack.c.l.b16 %v374
        %v387 = vunpack.c.l.b16 %v375
        %v388 = vunpack.c.l.b16 %v376
        %v389 = vpack.c.b16 %v386, %v385
        %v390 = vpack.c.b16 %v388, %v387
        %v394 = vsel %vm334, %v372, 0
        %396 = vmatpush.bf16.msra.mxu0 0
        %397 = vmatpush.bf16.msra.mxu0 0
        %398 = vmatpush.bf16.msra.mxu0 0
        %399 = vmatpush.bf16.msra.mxu0 0
        %400 = vmatpush.bf16.msra.mxu0 0
        %401 = vmatpush.bf16.msra.mxu0 0
        %402 = vmatpush.bf16.msra.mxu0 %v390
        %403 = vmatpush.bf16.msra.mxu0 %v389
        %404 = vmatmul.bf16.gmra.mxu0 %v394
        %v405 = vpop.f32.mrf.mxu0
        %v406 = vadd.f32 %v379, %v405
        %v407 = vpop.f32.mrf.mxu0
        %408 = vdwg.mxu0
        %v409 = vpack.c.bf16 %v406, %v406
        %vm410 = vcmask 257024
        %411 = vst.msk [vmem:[%s322] sm:$0xf] %vm410, %v409
        %413 = vrot.lane.b32.xlu0 %v409, 96
        %v414 = vpop.permute.xlu0 %413
        %416 = vst.msk [vmem:[%s329] sm:$0xf] %vm410, %v414
        %s417 = sand.u32 %s162, 1
        %s418 = scalar_lea.sflag [#allocation4], %s417
        %s419 = sand.u32 %s162, 1
        %s420 = smul.addr %s419, 4
        %s421 = scalar_lea.vmem [#allocation8], %s420
        %s422 = sand.u32 %s190, 1
        %s423 = scalar_lea.sflag [#allocation10], %s422
        %s424 = sand.u32 %s190, 1
        %s425 = smul.addr %s424, 4
        %s426 = scalar_lea.vmem [#allocation9], %s425
        // Predicated region
        $region53: #{tpu_custom_call.1} parent=39 // pred_check
          %p427 = pneg %p172
        $region54: #{tpu_custom_call.1} parent=39 // pred_check_branch
          %429 = sbr.rel (%p427) target = $region56
        $region55: #{tpu_custom_call.1} parent=39 // pred_region
          %431 = vsyncadd %s418, 0
          %s432 = sadd.s32 %s33, %s32
          %s433 = smul.addr %s432, 4
          %s434 = scalar_lea.hbm %s5, %s433
          %s436 = sshll.u32 %s421, 4
          %s437 = int_to_ptr.vmem [resolvable:$true] %s436
          %s438 = sshll.u32 %s434, 4
          %s439 = int_to_ptr.hbm [resolvable:$true] %s438
          %441 = dma.vmem_to_hbm [thread:$0]  %s437, 64, %s439, %s418
        $region56: #{tpu_custom_call.1} parent=39 // pred_fallthru
          _
        // Predicated region
        $region57: #{tpu_custom_call.1} parent=39 // pred_check
          %p442 = pneg %p200
        $region58: #{tpu_custom_call.1} parent=39 // pred_check_branch
          %444 = sbr.rel (%p442) target = $region60
        $region59: #{tpu_custom_call.1} parent=39 // pred_region
          %446 = vsyncadd %s423, 0
          %s447 = sadd.s32 %s33, %s32
          %s448 = smul.addr %s447, 4
          %s449 = scalar_lea.hbm %s6, %s448
          %s451 = sshll.u32 %s426, 4
          %s452 = int_to_ptr.vmem [resolvable:$true] %s451
          %s453 = sshll.u32 %s449, 4
          %s454 = int_to_ptr.hbm [resolvable:$true] %s453
          %456 = dma.vmem_to_hbm [thread:$0]  %s452, 64, %s454, %s423
        $region60: #{tpu_custom_call.1} parent=39 // pred_fallthru
          _
      $region40: #{tpu_custom_call.1} parent=5 // pred_fallthru
        _
      %p457 = scmp.le.s32.totalorder 2, %s23
      // Predicated region
      $region61: #{tpu_custom_call.1} parent=5 // pred_check
        %p458 = pneg %p457
      $region62: #{tpu_custom_call.1} parent=5 // pred_check_branch
        %460 = sbr.rel (%p458) target = $region64
      $region63: #{tpu_custom_call.1} parent=5 // pred_region
        %s461 = ssub.s32 %s23, 2
        // Predicated region
        $region65: #{tpu_custom_call.1} parent=63 // pred_check
          %p462 = pneg %p178
        $region66: #{tpu_custom_call.1} parent=63 // pred_check_branch
          %464 = sbr.rel (%p462) target = $region68
        $region67: #{tpu_custom_call.1} parent=63 // pred_region
          %s465 = sand.u32 %s163, 1
          %s466 = scalar_lea.sflag [#allocation4], %s465
          %s467 = sand.u32 %s163, 1
          %s468 = smul.addr %s467, 4
          %s469 = scalar_lea.vmem [#allocation8], %s468
          %471 = dma.done %s466, 64
        $region68: #{tpu_custom_call.1} parent=63 // pred_fallthru
          _
        // Predicated region
        $region69: #{tpu_custom_call.1} parent=63 // pred_check
          %p472 = pneg %p206
        $region70: #{tpu_custom_call.1} parent=63 // pred_check_branch
          %474 = sbr.rel (%p472) target = $region72
        $region71: #{tpu_custom_call.1} parent=63 // pred_region
          %s475 = sand.u32 %s191, 1
          %s476 = scalar_lea.sflag [#allocation10], %s475
          %s477 = sand.u32 %s191, 1
          %s478 = smul.addr %s477, 4
          %s479 = scalar_lea.vmem [#allocation9], %s478
          %481 = dma.done %s476, 64
        $region72: #{tpu_custom_call.1} parent=63 // pred_fallthru
          _
      $region64: #{tpu_custom_call.1} parent=5 // pred_fallthru
        _
    $region6: #{tpu_custom_call.1} parent=1 // loop_footer
      %s27 = sadd.s32 1, %s23
    $region7: #{tpu_custom_call.1} parent=1 // loop_footer_branch
      %22 = sbr.rel target = $region3
    $region8: #{tpu_custom_call.1} parent=1 // loop_exit
      _
    %482 = vsyncpa [#allocation3], 1
    %s483 = scalar_lea.sflag [#allocation3], 1
    %484 = vsyncpa %s483, 1
    %485 = vsyncpa [#allocation6], 1
    %486 = vsyncpa [#allocation4], 1
    %s487 = scalar_lea.sflag [#allocation4], 1
    %488 = vsyncpa %s487, 1
    %489 = vsyncpa [#allocation10], 1
    %s490 = scalar_lea.sflag [#allocation10], 1
    %491 = vsyncpa %s490, 1

</llo_original>
